<compile_context>
chip_gen: v7x
topology: tpu7x:2x2x1
jax: 0.10.0
libtpu: 0.0.40
codegen_flags: <defaults>
</compile_context>

<pallas_src>
import functools

import jax
import jax.numpy as jnp
from jax.experimental import pallas as pl
from jax.experimental.pallas import tpu as pltpu

LANE = 128     # TPU lane width; feature dims and source-node (K) dims are padded to this
SUBLANE = 8    # sublane granularity; final target-node dim is padded to this


def _round_up(n, m):
    return ((n + m - 1) // m) * m


# ----------------------------- fused Pallas kernel ----------------------------
def _sage_fused_kernel(*refs, num_layers):
    """All SAGE layers fused for one subgraph of the batch; intermediates stay in VMEM.

    refs layout:
      [adj_0, ..., adj_{L-1}, x, (w_l_0, w_r_0, b_0), ..., (w_l_{L-1}, w_r_{L-1}, b_{L-1}), out]
      adj_i : (1, n_tgt_pad_i, n_src_pad_i) bf16, rows pre-scaled by exact 1/deg on the host
      x     : (1, n_src_pad_0, C_in_pad)    bf16
      w_l_i : (C_in_pad_i, C_out_pad)       bf16   (stored [in, out])
      w_r_i : (C_in_pad_i, C_out_pad)       bf16
      b_i   : (1, C_out_pad)                f32
      out   : (1, n_tgt_pad_{L-1}, C_out_pad) f32
    """
    adj_refs = refs[:num_layers]
    x_ref = refs[num_layers]
    param_refs = refs[num_layers + 1: num_layers + 1 + 3 * num_layers]
    out_ref = refs[num_layers + 1 + 3 * num_layers]

    h = x_ref[0]                                  # (n_src_pad_0, C_pad) bf16 — no f32 round trip

    for i in range(num_layers):
        adj = adj_refs[i][0]                      # (n_tgt_pad, n_src_pad) bf16, row-normalized
        w_l = param_refs[3 * i][...]              # (C_in_pad, C_out_pad) bf16
        w_r = param_refs[3 * i + 1][...]          # (C_in_pad, C_out_pad) bf16
        bias = param_refs[3 * i + 2][...]         # (1, C_out_pad) f32

        n_tgt_pad = adj.shape[0]

        # Mean neighbor aggregation == single MXU matmul (adjacency pre-normalized on host).
        agg = jnp.dot(adj, h, preferred_element_type=jnp.float32)

        # Target nodes are a prefix of the source nodes (sublane-aligned slice, no copy).
        x_tgt = h[:n_tgt_pad, :]

        # lin_l(agg) + lin_r(x_tgt) + b_l, both dots accumulate in f32 on the MXU.
        out = (jnp.dot(agg.astype(jnp.bfloat16), w_l, preferred_element_type=jnp.float32)
               + jnp.dot(x_tgt, w_r, preferred_element_type=jnp.float32)
               + bias)

        if i != num_layers - 1:
            out = jnp.maximum(out, 0.0)           # relu
            # TODO(synk): dropout(p=0.5, training=True) omitted (identity / eval mode).
            h = out.astype(jnp.bfloat16)          # next layer's source activations (VMEM-resident)
        else:
            out_ref[0] = out.astype(out_ref.dtype)


# ------------------------------ prep (host side, out of the hot path) ---------
def padded_node_sizes(sizes):
    """Per-layer (n_src_pad, n_tgt_pad). Source axis (matmul K / adjacency lane axis) padded
    to 128; the final target axis only needs sublane (8) alignment. The target pad of layer i
    must equal the source pad of layer i+1 (it is the same node set)."""
    num_layers = len(sizes)
    pads = []
    for i, (n_src, n_tgt) in enumerate(sizes):
        src_pad = _round_up(n_src, LANE)
        tgt_pad = _round_up(n_tgt, LANE) if i < num_layers - 1 else _round_up(n_tgt, SUBLANE)
        pads.append((src_pad, tgt_pad))
    for i in range(num_layers - 1):
        assert pads[i][1] == pads[i + 1][0], "layer-chain padding mismatch"
    return pads


def build_mean_adj(edge_index, size, padded_size):
    """Dense row-normalized adjacency [n_tgt_pad, n_src_pad] in bf16.

    A[d, s] = (#edges s->d) / deg(d); degrees are exact f32 scatter-adds of ones.
    Padded rows/cols are zero. Runs once per sampled minibatch (cacheable), NOT in the
    per-call hot path.
    """
    n_src, n_tgt = size
    n_src_pad, n_tgt_pad = padded_size
    src, dst = edge_index[0], edge_index[1]
    counts = jnp.zeros((n_tgt, n_src), jnp.float32).at[dst, src].add(1.0)
    deg = jnp.zeros((n_tgt, 1), jnp.float32).at[dst, 0].add(1.0)
    adj = counts * jnp.where(deg > 0.0, 1.0 / deg, 0.0)
    adj = jnp.pad(adj, ((0, n_tgt_pad - n_tgt), (0, n_src_pad - n_src)))
    return adj.astype(jnp.bfloat16)


def init_sage_params(key, in_channels, hidden_channels, num_layers):
    """Deterministic parameter init (shapes follow PyG SAGEConv: lin_l w/ bias, lin_r no bias)."""
    params = []
    for i in range(num_layers):
        ic = in_channels if i == 0 else hidden_channels
        key, k1, k2, k3 = jax.random.split(key, 4)
        scale = 1.0 / jnp.sqrt(jnp.float32(ic))
        w_l = jax.random.normal(k1, (ic, hidden_channels), jnp.float32) * scale  # stored [in, out]
        b_l = jax.random.normal(k2, (1, hidden_channels), jnp.float32) * 0.01
        w_r = jax.random.normal(k3, (ic, hidden_channels), jnp.float32) * scale  # stored [in, out]
        params.append((w_l, b_l, w_r))
    return params


def prepare_params(params, in_channels, hidden_channels):
    """Pad + bf16-cast weights ONCE per model (static); biases stay f32."""
    in_pad = _round_up(in_channels, LANE)
    hid_pad = _round_up(hidden_channels, LANE)
    prepped = []
    for i, (w_l, b_l, w_r) in enumerate(params):
        ic = in_channels if i == 0 else hidden_channels
        ic_pad = in_pad if i == 0 else hid_pad
        w_l_p = jnp.pad(w_l, ((0, ic_pad - ic), (0, hid_pad - hidden_channels))).astype(jnp.bfloat16)
        w_r_p = jnp.pad(w_r, ((0, ic_pad - ic), (0, hid_pad - hidden_channels))).astype(jnp.bfloat16)
        b_p = jnp.pad(b_l, ((0, 0), (0, hid_pad - hidden_channels))).astype(jnp.float32)
        prepped.append((w_l_p, w_r_p, b_p))
    return prepped


# ------------------------------ forward (hot path) -----------------------------
def sage_forward(x_batch, adj_batch, prepped_params, hidden_channels, n_out):
    """Batched multi-layer SAGE forward in a single fused Pallas kernel.

    x_batch   : (B, n_src_pad_0, C_in_pad) bf16
    adj_batch : list of (B, n_tgt_pad_i, n_src_pad_i) bf16, row-normalized, layer order
    prepped_params : list of (w_l_pad, w_r_pad, b_pad) from prepare_params
    Returns (B, n_out, hidden_channels) f32.

    NOTE: whole-subgraph-in-VMEM design is appropriate for small sampled per-hop blocks
    (as here); for production fanouts retile with a (tgt_tile, src_tile) reduction grid.
    """
    num_layers = len(prepped_params)
    batch = x_batch.shape[0]
    hid_pad = prepped_params[0][0].shape[1]
    n_tgt_last_pad = adj_batch[-1].shape[1]

    kernel_inputs = []
    in_specs = []
    for adj in adj_batch:
        in_specs.append(pl.BlockSpec((1,) + adj.shape[1:], lambda b: (b, 0, 0)))
        kernel_inputs.append(adj)
    in_specs.append(pl.BlockSpec((1,) + x_batch.shape[1:], lambda b: (b, 0, 0)))
    kernel_inputs.append(x_batch)
    for (w_l, w_r, bias) in prepped_params:
        in_specs += [pl.BlockSpec(w_l.shape, lambda b: (0, 0)),
                     pl.BlockSpec(w_r.shape, lambda b: (0, 0)),
                     pl.BlockSpec(bias.shape, lambda b: (0, 0))]
        kernel_inputs += [w_l, w_r, bias]

    out_padded = pl.pallas_call(
        functools.partial(_sage_fused_kernel, num_layers=num_layers),
        grid=(batch,),
        out_shape=jax.ShapeDtypeStruct((batch, n_tgt_last_pad, hid_pad), jnp.float32),
        in_specs=in_specs,
        out_specs=pl.BlockSpec((1, n_tgt_last_pad, hid_pad), lambda b: (b, 0, 0)),
        compiler_params=pltpu.CompilerParams(dimension_semantics=("parallel",)),
    )(*kernel_inputs)

    return out_padded[:, :n_out, :hidden_channels]


# ----------------------------------- main -------------------------------------
if __name__ == "__main__":
    key = jax.random.PRNGKey(0)

    in_channels, hidden_channels, num_layers = 16, 32, 2
    n0, n1, n2 = 64, 32, 16          # sampled node counts per hop (targets are a prefix)
    e0, e1 = 256, 128                # edges per sampled bipartite graph
    batch = 4                        # sampled subgraphs fused per call (MXU occupancy / v7x 2-TC)

    sizes = [(n0, n1), (n1, n2)]
    pads = padded_node_sizes(sizes)                    # [(128, 128), (128, 16)]
    in_pad = _round_up(in_channels, LANE)

    key, kp = jax.random.split(key)
    params = init_sage_params(kp, in_channels, hidden_channels, num_layers)
    prepped = prepare_params(params, in_channels, hidden_channels)   # once per model

    xs = []
    adj_lists = [[] for _ in range(num_layers)]
    for _ in range(batch):
        key, kx, ks0, kd0, ks1, kd1 = jax.random.split(key, 6)
        x = jax.random.normal(kx, (n0, in_channels), jnp.float32)
        edge_index0 = jnp.stack([
            jax.random.randint(ks0, (e0,), 0, n0),     # source node ids (into x of size n0)
            jax.random.randint(kd0, (e0,), 0, n1),     # target node ids (into x[:n1])
        ])
        edge_index1 = jnp.stack([
            jax.random.randint(ks1, (e1,), 0, n1),
            jax.random.randint(kd1, (e1,), 0, n2),
        ])
        edge_lists = [edge_index0, edge_index1]
        xs.append(jnp.pad(x, ((0, pads[0][0] - n0), (0, in_pad - in_channels))).astype(jnp.bfloat16))
        for li in range(num_layers):
            adj_lists[li].append(build_mean_adj(edge_lists[li], sizes[li], pads[li]))

    x_batch = jnp.stack(xs)                            # (B, 128, 128) bf16
    adj_batch = [jnp.stack(a) for a in adj_lists]      # [(B, 128, 128), (B, 16, 128)] bf16

    out = sage_forward(x_batch, adj_batch, prepped, hidden_channels, n2)
    out = jax.block_until_ready(out)

    assert out.shape == (batch, n2, hidden_channels), out.shape
    assert out.dtype == jnp.float32
    assert bool(jnp.all(jnp.isfinite(out)))
    print("KERNEL_OK")
</pallas_src>

<mosaic_0001>
module attributes {stable_mosaic.version = 11 : i64} {
  func.func @_sage_fused_kernel(%arg0: i32, %arg1: memref<1x128x128xbf16, #tpu.memory_space<vmem>>, %arg2: memref<1x16x128xbf16, #tpu.memory_space<vmem>>, %arg3: memref<1x128x128xbf16, #tpu.memory_space<vmem>>, %arg4: memref<128x128xbf16, #tpu.memory_space<vmem>>, %arg5: memref<128x128xbf16, #tpu.memory_space<vmem>>, %arg6: memref<1x128xf32, #tpu.memory_space<vmem>>, %arg7: memref<128x128xbf16, #tpu.memory_space<vmem>>, %arg8: memref<128x128xbf16, #tpu.memory_space<vmem>>, %arg9: memref<1x128xf32, #tpu.memory_space<vmem>>, %arg10: memref<1x16x128xf32, #tpu.memory_space<vmem>>) attributes {dimension_semantics = [#tpu.dimension_semantics<parallel>], iteration_bounds = array<i64: 4>, scalar_prefetch = 0 : i64, scratch_operands = 0 : i64, tpu.core_type = #tpu.core_type<tc>, window_params = [{transform_indices = @transform_0, window_bounds = array<i64: 1, 128, 128>}, {transform_indices = @transform_1, window_bounds = array<i64: 1, 16, 128>}, {transform_indices = @transform_2, window_bounds = array<i64: 1, 128, 128>}, {pipeline_mode = #tpu.pipeline_mode<synchronous>, transform_indices = @transform_3, window_bounds = array<i64: 128, 128>}, {pipeline_mode = #tpu.pipeline_mode<synchronous>, transform_indices = @transform_4, window_bounds = array<i64: 128, 128>}, {pipeline_mode = #tpu.pipeline_mode<synchronous>, transform_indices = @transform_5, window_bounds = array<i64: 1, 128>}, {pipeline_mode = #tpu.pipeline_mode<synchronous>, transform_indices = @transform_6, window_bounds = array<i64: 128, 128>}, {pipeline_mode = #tpu.pipeline_mode<synchronous>, transform_indices = @transform_7, window_bounds = array<i64: 128, 128>}, {pipeline_mode = #tpu.pipeline_mode<synchronous>, transform_indices = @transform_8, window_bounds = array<i64: 1, 128>}, {transform_indices = @transform_9, window_bounds = array<i64: 1, 16, 128>}]} {
    %c0 = arith.constant 0 : index
    %c0_0 = arith.constant 0 : index
    %c0_1 = arith.constant 0 : index
    %0 = vector.load %arg3[%c0, %c0_0, %c0_1] : memref<1x128x128xbf16, #tpu.memory_space<vmem>>, vector<1x128x128xbf16>
    %1 = vector.shape_cast %0 : vector<1x128x128xbf16> to vector<128x128xbf16>
    %c0_2 = arith.constant 0 : index
    %c0_3 = arith.constant 0 : index
    %c0_4 = arith.constant 0 : index
    %2 = vector.load %arg1[%c0_2, %c0_3, %c0_4] : memref<1x128x128xbf16, #tpu.memory_space<vmem>>, vector<1x128x128xbf16>
    %3 = vector.shape_cast %2 : vector<1x128x128xbf16> to vector<128x128xbf16>
    %c0_5 = arith.constant 0 : index
    %c0_6 = arith.constant 0 : index
    %4 = vector.load %arg4[%c0_5, %c0_6] : memref<128x128xbf16, #tpu.memory_space<vmem>>, vector<128x128xbf16>
    %c0_7 = arith.constant 0 : index
    %c0_8 = arith.constant 0 : index
    %5 = vector.load %arg5[%c0_7, %c0_8] : memref<128x128xbf16, #tpu.memory_space<vmem>>, vector<128x128xbf16>
    %c0_9 = arith.constant 0 : index
    %c0_10 = arith.constant 0 : index
    %6 = vector.load %arg6[%c0_9, %c0_10] : memref<1x128xf32, #tpu.memory_space<vmem>>, vector<1x128xf32>
    %cst = arith.constant dense<0.000000e+00> : vector<128x128xf32>
    %7 = tpu.matmul %3, %1, %cst {dimension_numbers = #tpu.dot_dimension_numbers<[1], [0], [0], [1], [0, 0, 1, 1], [], []>} : vector<128x128xbf16>, vector<128x128xbf16>, vector<128x128xf32> -> vector<128x128xf32>
    %8 = arith.truncf %7 : vector<128x128xf32> to vector<128x128xbf16>
    %cst_11 = arith.constant dense<0.000000e+00> : vector<128x128xf32>
    %9 = tpu.matmul %8, %4, %cst_11 {dimension_numbers = #tpu.dot_dimension_numbers<[1], [0], [0], [1], [0, 0, 1, 1], [], []>} : vector<128x128xbf16>, vector<128x128xbf16>, vector<128x128xf32> -> vector<128x128xf32>
    %cst_12 = arith.constant dense<0.000000e+00> : vector<128x128xf32>
    %10 = tpu.matmul %1, %5, %cst_12 {dimension_numbers = #tpu.dot_dimension_numbers<[1], [0], [0], [1], [0, 0, 1, 1], [], []>} : vector<128x128xbf16>, vector<128x128xbf16>, vector<128x128xf32> -> vector<128x128xf32>
    %11 = arith.addf %9, %10 : vector<128x128xf32>
    %12 = vector.broadcast %6 : vector<1x128xf32> to vector<128x128xf32>
    %13 = arith.addf %11, %12 : vector<128x128xf32>
    %cst_13 = arith.constant 0.000000e+00 : f32
    %14 = vector.broadcast %cst_13 : f32 to vector<128x128xf32>
    %15 = arith.maximumf %13, %14 : vector<128x128xf32>
    %16 = arith.truncf %15 : vector<128x128xf32> to vector<128x128xbf16>
    %c0_14 = arith.constant 0 : index
    %c0_15 = arith.constant 0 : index
    %c0_16 = arith.constant 0 : index
    %17 = vector.load %arg2[%c0_14, %c0_15, %c0_16] : memref<1x16x128xbf16, #tpu.memory_space<vmem>>, vector<1x16x128xbf16>
    %18 = vector.shape_cast %17 : vector<1x16x128xbf16> to vector<16x128xbf16>
    %c0_17 = arith.constant 0 : index
    %c0_18 = arith.constant 0 : index
    %19 = vector.load %arg7[%c0_17, %c0_18] : memref<128x128xbf16, #tpu.memory_space<vmem>>, vector<128x128xbf16>
    %c0_19 = arith.constant 0 : index
    %c0_20 = arith.constant 0 : index
    %20 = vector.load %arg8[%c0_19, %c0_20] : memref<128x128xbf16, #tpu.memory_space<vmem>>, vector<128x128xbf16>
    %c0_21 = arith.constant 0 : index
    %c0_22 = arith.constant 0 : index
    %21 = vector.load %arg9[%c0_21, %c0_22] : memref<1x128xf32, #tpu.memory_space<vmem>>, vector<1x128xf32>
    %cst_23 = arith.constant dense<0.000000e+00> : vector<16x128xf32>
    %22 = tpu.matmul %18, %16, %cst_23 {dimension_numbers = #tpu.dot_dimension_numbers<[1], [0], [0], [1], [0, 0, 1, 1], [], []>} : vector<16x128xbf16>, vector<128x128xbf16>, vector<16x128xf32> -> vector<16x128xf32>
    %23 = vector.extract_strided_slice %16 {offsets = [0, 0], sizes = [16, 128], strides = [1, 1]} : vector<128x128xbf16> to vector<16x128xbf16>
    %24 = arith.truncf %22 : vector<16x128xf32> to vector<16x128xbf16>
    %cst_24 = arith.constant dense<0.000000e+00> : vector<16x128xf32>
    %25 = tpu.matmul %24, %19, %cst_24 {dimension_numbers = #tpu.dot_dimension_numbers<[1], [0], [0], [1], [0, 0, 1, 1], [], []>} : vector<16x128xbf16>, vector<128x128xbf16>, vector<16x128xf32> -> vector<16x128xf32>
    %cst_25 = arith.constant dense<0.000000e+00> : vector<16x128xf32>
    %26 = tpu.matmul %23, %20, %cst_25 {dimension_numbers = #tpu.dot_dimension_numbers<[1], [0], [0], [1], [0, 0, 1, 1], [], []>} : vector<16x128xbf16>, vector<128x128xbf16>, vector<16x128xf32> -> vector<16x128xf32>
    %27 = arith.addf %25, %26 : vector<16x128xf32>
    %28 = vector.broadcast %21 : vector<1x128xf32> to vector<16x128xf32>
    %29 = arith.addf %27, %28 : vector<16x128xf32>
    %c0_26 = arith.constant 0 : index
    %c0_27 = arith.constant 0 : index
    %c0_28 = arith.constant 0 : index
    %30 = vector.load %arg10[%c0_26, %c0_27, %c0_28] : memref<1x16x128xf32, #tpu.memory_space<vmem>>, vector<1x16x128xf32>
    %31 = vector.shape_cast %30 : vector<1x16x128xf32> to vector<16x128xf32>
    %32 = vector.shape_cast %29 : vector<16x128xf32> to vector<1x16x128xf32>
    tpu.vector_store %arg10[%c0_26, %c0_27, %c0_28], %32 {strides = array<i32>} : memref<1x16x128xf32, #tpu.memory_space<vmem>>, vector<1x16x128xf32>,
    return
  }
  func.func @transform_0(%arg0: i32) -> (i32, i32, i32) {
    %c0_i32 = arith.constant 0 : i32
    %c0_i32_0 = arith.constant 0 : i32
    %c0_i32_1 = arith.constant 0 : i32
    return %arg0, %c0_i32, %c0_i32_0 : i32, i32, i32
  }
  func.func @transform_1(%arg0: i32) -> (i32, i32, i32) {
    %c0_i32 = arith.constant 0 : i32
    %c0_i32_0 = arith.constant 0 : i32
    %c0_i32_1 = arith.constant 0 : i32
    return %arg0, %c0_i32, %c0_i32_0 : i32, i32, i32
  }
  func.func @transform_2(%arg0: i32) -> (i32, i32, i32) {
    %c0_i32 = arith.constant 0 : i32
    %c0_i32_0 = arith.constant 0 : i32
    %c0_i32_1 = arith.constant 0 : i32
    return %arg0, %c0_i32, %c0_i32_0 : i32, i32, i32
  }
  func.func @transform_3(%arg0: i32) -> (i32, i32) {
    %c0_i32 = arith.constant 0 : i32
    %c0_i32_0 = arith.constant 0 : i32
    %c0_i32_1 = arith.constant 0 : i32
    return %c0_i32, %c0_i32_0 : i32, i32
  }
  func.func @transform_4(%arg0: i32) -> (i32, i32) {
    %c0_i32 = arith.constant 0 : i32
    %c0_i32_0 = arith.constant 0 : i32
    %c0_i32_1 = arith.constant 0 : i32
    return %c0_i32, %c0_i32_0 : i32, i32
  }
  func.func @transform_5(%arg0: i32) -> (i32, i32) {
    %c0_i32 = arith.constant 0 : i32
    %c0_i32_0 = arith.constant 0 : i32
    %c0_i32_1 = arith.constant 0 : i32
    return %c0_i32, %c0_i32_0 : i32, i32
  }
  func.func @transform_6(%arg0: i32) -> (i32, i32) {
    %c0_i32 = arith.constant 0 : i32
    %c0_i32_0 = arith.constant 0 : i32
    %c0_i32_1 = arith.constant 0 : i32
    return %c0_i32, %c0_i32_0 : i32, i32
  }
  func.func @transform_7(%arg0: i32) -> (i32, i32) {
    %c0_i32 = arith.constant 0 : i32
    %c0_i32_0 = arith.constant 0 : i32
    %c0_i32_1 = arith.constant 0 : i32
    return %c0_i32, %c0_i32_0 : i32, i32
  }
  func.func @transform_8(%arg0: i32) -> (i32, i32) {
    %c0_i32 = arith.constant 0 : i32
    %c0_i32_0 = arith.constant 0 : i32
    %c0_i32_1 = arith.constant 0 : i32
    return %c0_i32, %c0_i32_0 : i32, i32
  }
  func.func @transform_9(%arg0: i32) -> (i32, i32, i32) {
    %c0_i32 = arith.constant 0 : i32
    %c0_i32_0 = arith.constant 0 : i32
    %c0_i32_1 = arith.constant 0 : i32
    return %arg0, %c0_i32, %c0_i32_0 : i32, i32, i32
  }
}

</mosaic_0001>

<llo_original>
// kernel: tpu_custom_call.1
$region0: #{tpu_custom_call.1}
  #allocation0 [shape = 'u32[]', space=smem, size = 0x4, offset = 0x4, fixed_abs, tag = 'smem constant byte address 0x4 - core index']
  #allocation1 [shape = 'u32[144,128]{1,0:T(1,128)}', space=vmem, size = 0x12000, scoped, tag = 'internal scratch']
  %s0 = inlined_call_operand.hbm [shape: bf16[4,128,128], index: 0, kind: input, shape index: {}]
  %s1 = inlined_call_operand.hbm [shape: bf16[4,16,128], index: 1, kind: input, shape index: {}]
  %s2 = inlined_call_operand.hbm [shape: bf16[4,128,128], index: 2, kind: input, shape index: {}]
  %s3 = inlined_call_operand.hbm [shape: bf16[128,128], index: 3, kind: input, shape index: {}]
  %s4 = inlined_call_operand.hbm [shape: bf16[128,128], index: 4, kind: input, shape index: {}]
  %s5 = inlined_call_operand.vmem [shape: f32[1,128], index: 5, kind: input, shape index: {}]
  %s6 = inlined_call_operand.hbm [shape: bf16[128,128], index: 6, kind: input, shape index: {}]
  %s7 = inlined_call_operand.hbm [shape: bf16[128,128], index: 7, kind: input, shape index: {}]
  %s8 = inlined_call_operand.vmem [shape: f32[1,128], index: 8, kind: input, shape index: {}]
  %s9 = inlined_call_operand.hbm [shape: f32[4,16,128], index: 9, kind: output, shape index: {}]
  %s10 = sld [smem:[#allocation0]]
  $region97: #{tpu_custom_call.1} parent=0
    _
  %s12 = ssub.s32 1, %s10
  %s13 = scalar_select 0, %s12, %s10
  $region1: #{tpu_custom_call.1} parent=0
    #allocation2 [shape = 'u8[65536]{0}', space=vmem, size = 0x10000, scoped, tag = 'input window, operand 0']
    #allocation3 [shape = 's32[2]{0}', space=sflag, size = 0x8, scoped, tag = 'scoped memory for tpu_custom_call.1']
    #allocation4 [shape = 's32[2]{0}', space=sflag, size = 0x8, scoped, tag = 'scoped memory for tpu_custom_call.1']
    #allocation5 [shape = 'u8[8192]{0}', space=vmem, size = 0x2000, scoped, tag = 'input window, operand 1']
    #allocation6 [shape = 's32[2]{0}', space=sflag, size = 0x8, scoped, tag = 'scoped memory for tpu_custom_call.1']
    #allocation7 [shape = 'u8[65536]{0}', space=vmem, size = 0x10000, scoped, tag = 'input window, operand 2']
    #allocation8 [shape = 'u8[32768]{0}', space=vmem, size = 0x8000, scoped, tag = 'input window, operand 3, single buffered']
    #allocation9 [shape = 's32[1]{0}', space=sflag, size = 0x4, scoped, tag = 'scoped memory for tpu_custom_call.1']
    #allocation10 [shape = 'u8[32768]{0}', space=vmem, size = 0x8000, scoped, tag = 'input window, operand 4, single buffered']
    #allocation11 [shape = 'u8[32768]{0}', space=vmem, size = 0x8000, scoped, tag = 'input window, operand 6, single buffered']
    #allocation12 [shape = 's32[1]{0}', space=sflag, size = 0x4, scoped, tag = 'scoped memory for tpu_custom_call.1']
    #allocation13 [shape = 'u8[32768]{0}', space=vmem, size = 0x8000, scoped, tag = 'input window, operand 7, single buffered']
    #allocation14 [shape = 'u8[16384]{0}', space=vmem, size = 0x4000, scoped, tag = 'output window, operand 0']
    %14 = vsyncpa [#allocation3], 0
    %s15 = scalar_lea.sflag [#allocation3], 1
    %16 = vsyncpa %s15, 0
    %17 = vsyncpa [#allocation6], 0
    %s18 = scalar_lea.sflag [#allocation6], 1
    %19 = vsyncpa %s18, 0
    %20 = vsyncpa [#allocation9], 0
    %21 = vsyncpa [#allocation12], 0
    %22 = vsyncpa [#allocation4], 0
    %s23 = scalar_lea.sflag [#allocation4], 1
    %24 = vsyncpa %s23, 0
    loop: start=0, step=1, limit=6
    $region2: #{tpu_custom_call.1} parent=1 // loop_pre_header
      _
    $region3: #{tpu_custom_call.1} parent=1 // loop_header
      %s26 = sphi 0, %s30
      %p27 = scmp.ge.s32.totalorder %s26, 6
      %s36 = sphi 0, %s38
      %s39 = sphi 0, %s36
      %s40 = sphi 0, %s39
      %s56 = sphi 0, %s40
      %s62 = sphi 0, %s64
      %s65 = sphi 0, %s62
      %s66 = sphi 0, %s65
      %s82 = sphi 0, %s66
      %s88 = sphi 0, %s90
      %s91 = sphi 0, %s88
      %s92 = sphi 0, %s91
      %s108 = sphi 0, %s92
      %s112 = sphi 0, %s112
      %s114 = sphi 0, %s112
      %s115 = sphi 0, %s114
      %s129 = sphi 0, %s115
      %s133 = sphi 0, %s133
      %s135 = sphi 0, %s133
      %s136 = sphi 0, %s135
      %s150 = sphi 0, %s136
      %s154 = sphi 0, %s154
      %s156 = sphi 0, %s154
      %s157 = sphi 0, %s156
      %s171 = sphi 0, %s157
      %s175 = sphi 0, %s175
      %s177 = sphi 0, %s175
      %s178 = sphi 0, %s177
      %s192 = sphi 0, %s178
      %s196 = sphi 0, %s196
      %s198 = sphi 0, %s196
      %s199 = sphi 0, %s198
      %s213 = sphi 0, %s199
      %s217 = sphi 0, %s217
      %s219 = sphi 0, %s217
      %s220 = sphi 0, %s219
      %s234 = sphi 0, %s220
      %s240 = sphi 0, %s242
      %s243 = sphi 0, %s240
      %s244 = sphi 0, %s243
      %s260 = sphi 0, %s244
    $region4: #{tpu_custom_call.1} parent=1 // loop_header_branch
      %29 = sbr.rel (%p27) target = $region8
    $region5: #{tpu_custom_call.1} parent=1 // loop_body
      %s31 = ssub.s32 %s26, 1
      %s32 = ssub.s32 %s26, 2
      %s33 = sadd.s32 %s26, 1
      %s34 = ssub.s32 %s26, %s33
      %p35 = scmp.eq.s32.totalorder %s34, 0
      %s37 = sadd.s32 %s36, 1
      %s38 = scalar_select %p35, %s36, %s37
      %p41 = pneg %p35
      %p42 = scmp.eq.s32.totalorder %s26, 3
      %p43 = por %p41, %p42
      %p44 = scmp.ne.s32.totalorder %s36, %s39
      %p45 = scmp.eq.s32.totalorder %s26, 0
      %p46 = por %p44, %p45
      %p47 = scmp.ne.s32.totalorder %s36, %s39
      %p48 = scmp.eq.s32.totalorder %s31, 3
      %p49 = por %p47, %p48
      %p50 = scmp.ne.s32.totalorder %s39, %s40
      %p51 = scmp.eq.s32.totalorder %s31, 0
      %p52 = por %p50, %p51
      %p53 = scmp.ne.s32.totalorder %s39, %s40
      %p54 = scmp.eq.s32.totalorder %s32, 3
      %p55 = por %p53, %p54
      %p57 = scmp.ne.s32.totalorder %s40, %s56
      %p58 = scmp.eq.s32.totalorder %s32, 0
      %p59 = por %p57, %p58
      %s60 = ssub.s32 %s26, %s33
      %p61 = scmp.eq.s32.totalorder %s60, 0
      %s63 = sadd.s32 %s62, 1
      %s64 = scalar_select %p61, %s62, %s63
      %p67 = pneg %p61
      %p68 = scmp.eq.s32.totalorder %s26, 3
      %p69 = por %p67, %p68
      %p70 = scmp.ne.s32.totalorder %s62, %s65
      %p71 = scmp.eq.s32.totalorder %s26, 0
      %p72 = por %p70, %p71
      %p73 = scmp.ne.s32.totalorder %s62, %s65
      %p74 = scmp.eq.s32.totalorder %s31, 3
      %p75 = por %p73, %p74
      %p76 = scmp.ne.s32.totalorder %s65, %s66
      %p77 = scmp.eq.s32.totalorder %s31, 0
      %p78 = por %p76, %p77
      %p79 = scmp.ne.s32.totalorder %s65, %s66
      %p80 = scmp.eq.s32.totalorder %s32, 3
      %p81 = por %p79, %p80
      %p83 = scmp.ne.s32.totalorder %s66, %s82
      %p84 = scmp.eq.s32.totalorder %s32, 0
      %p85 = por %p83, %p84
      %s86 = ssub.s32 %s26, %s33
      %p87 = scmp.eq.s32.totalorder %s86, 0
      %s89 = sadd.s32 %s88, 1
      %s90 = scalar_select %p87, %s88, %s89
      %p93 = pneg %p87
      %p94 = scmp.eq.s32.totalorder %s26, 3
      %p95 = por %p93, %p94
      %p96 = scmp.ne.s32.totalorder %s88, %s91
      %p97 = scmp.eq.s32.totalorder %s26, 0
      %p98 = por %p96, %p97
      %p99 = scmp.ne.s32.totalorder %s88, %s91
      %p100 = scmp.eq.s32.totalorder %s31, 3
      %p101 = por %p99, %p100
      %p102 = scmp.ne.s32.totalorder %s91, %s92
      %p103 = scmp.eq.s32.totalorder %s31, 0
      %p104 = por %p102, %p103
      %p105 = scmp.ne.s32.totalorder %s91, %s92
      %p106 = scmp.eq.s32.totalorder %s32, 3
      %p107 = por %p105, %p106
      %p109 = scmp.ne.s32.totalorder %s92, %s108
      %p110 = scmp.eq.s32.totalorder %s32, 0
      %p111 = por %p109, %p110
      %s113 = sadd.s32 %s112, 1
      %p116 = scmp.eq.s32.totalorder %s26, 3
      %p117 = scmp.ne.s32.totalorder %s112, %s114
      %p118 = scmp.eq.s32.totalorder %s26, 0
      %p119 = por %p117, %p118
      %p120 = scmp.ne.s32.totalorder %s112, %s114
      %p121 = scmp.eq.s32.totalorder %s31, 3
      %p122 = por %p120, %p121
      %p123 = scmp.ne.s32.totalorder %s114, %s115
      %p124 = scmp.eq.s32.totalorder %s31, 0
      %p125 = por %p123, %p124
      %p126 = scmp.ne.s32.totalorder %s114, %s115
      %p127 = scmp.eq.s32.totalorder %s32, 3
      %p128 = por %p126, %p127
      %p130 = scmp.ne.s32.totalorder %s115, %s129
      %p131 = scmp.eq.s32.totalorder %s32, 0
      %p132 = por %p130, %p131
      %s134 = sadd.s32 %s133, 1
      %p137 = scmp.eq.s32.totalorder %s26, 3
      %p138 = scmp.ne.s32.totalorder %s133, %s135
      %p139 = scmp.eq.s32.totalorder %s26, 0
      %p140 = por %p138, %p139
      %p141 = scmp.ne.s32.totalorder %s133, %s135
      %p142 = scmp.eq.s32.totalorder %s31, 3
      %p143 = por %p141, %p142
      %p144 = scmp.ne.s32.totalorder %s135, %s136
      %p145 = scmp.eq.s32.totalorder %s31, 0
      %p146 = por %p144, %p145
      %p147 = scmp.ne.s32.totalorder %s135, %s136
      %p148 = scmp.eq.s32.totalorder %s32, 3
      %p149 = por %p147, %p148
      %p151 = scmp.ne.s32.totalorder %s136, %s150
      %p152 = scmp.eq.s32.totalorder %s32, 0
      %p153 = por %p151, %p152
      %s155 = sadd.s32 %s154, 1
      %p158 = scmp.eq.s32.totalorder %s26, 3
      %p159 = scmp.ne.s32.totalorder %s154, %s156
      %p160 = scmp.eq.s32.totalorder %s26, 0
      %p161 = por %p159, %p160
      %p162 = scmp.ne.s32.totalorder %s154, %s156
      %p163 = scmp.eq.s32.totalorder %s31, 3
      %p164 = por %p162, %p163
      %p165 = scmp.ne.s32.totalorder %s156, %s157
      %p166 = scmp.eq.s32.totalorder %s31, 0
      %p167 = por %p165, %p166
      %p168 = scmp.ne.s32.totalorder %s156, %s157
      %p169 = scmp.eq.s32.totalorder %s32, 3
      %p170 = por %p168, %p169
      %p172 = scmp.ne.s32.totalorder %s157, %s171
      %p173 = scmp.eq.s32.totalorder %s32, 0
      %p174 = por %p172, %p173
      %s176 = sadd.s32 %s175, 1
      %p179 = scmp.eq.s32.totalorder %s26, 3
      %p180 = scmp.ne.s32.totalorder %s175, %s177
      %p181 = scmp.eq.s32.totalorder %s26, 0
      %p182 = por %p180, %p181
      %p183 = scmp.ne.s32.totalorder %s175, %s177
      %p184 = scmp.eq.s32.totalorder %s31, 3
      %p185 = por %p183, %p184
      %p186 = scmp.ne.s32.totalorder %s177, %s178
      %p187 = scmp.eq.s32.totalorder %s31, 0
      %p188 = por %p186, %p187
      %p189 = scmp.ne.s32.totalorder %s177, %s178
      %p190 = scmp.eq.s32.totalorder %s32, 3
      %p191 = por %p189, %p190
      %p193 = scmp.ne.s32.totalorder %s178, %s192
      %p194 = scmp.eq.s32.totalorder %s32, 0
      %p195 = por %p193, %p194
      %s197 = sadd.s32 %s196, 1
      %p200 = scmp.eq.s32.totalorder %s26, 3
      %p201 = scmp.ne.s32.totalorder %s196, %s198
      %p202 = scmp.eq.s32.totalorder %s26, 0
      %p203 = por %p201, %p202
      %p204 = scmp.ne.s32.totalorder %s196, %s198
      %p205 = scmp.eq.s32.totalorder %s31, 3
      %p206 = por %p204, %p205
      %p207 = scmp.ne.s32.totalorder %s198, %s199
      %p208 = scmp.eq.s32.totalorder %s31, 0
      %p209 = por %p207, %p208
      %p210 = scmp.ne.s32.totalorder %s198, %s199
      %p211 = scmp.eq.s32.totalorder %s32, 3
      %p212 = por %p210, %p211
      %p214 = scmp.ne.s32.totalorder %s199, %s213
      %p215 = scmp.eq.s32.totalorder %s32, 0
      %p216 = por %p214, %p215
      %s218 = sadd.s32 %s217, 1
      %p221 = scmp.eq.s32.totalorder %s26, 3
      %p222 = scmp.ne.s32.totalorder %s217, %s219
      %p223 = scmp.eq.s32.totalorder %s26, 0
      %p224 = por %p222, %p223
      %p225 = scmp.ne.s32.totalorder %s217, %s219
      %p226 = scmp.eq.s32.totalorder %s31, 3
      %p227 = por %p225, %p226
      %p228 = scmp.ne.s32.totalorder %s219, %s220
      %p229 = scmp.eq.s32.totalorder %s31, 0
      %p230 = por %p228, %p229
      %p231 = scmp.ne.s32.totalorder %s219, %s220
      %p232 = scmp.eq.s32.totalorder %s32, 3
      %p233 = por %p231, %p232
      %p235 = scmp.ne.s32.totalorder %s220, %s234
      %p236 = scmp.eq.s32.totalorder %s32, 0
      %p237 = por %p235, %p236
      %s238 = ssub.s32 %s26, %s33
      %p239 = scmp.eq.s32.totalorder %s238, 0
      %s241 = sadd.s32 %s240, 1
      %s242 = scalar_select %p239, %s240, %s241
      %p245 = pneg %p239
      %p246 = scmp.eq.s32.totalorder %s26, 3
      %p247 = por %p245, %p246
      %p248 = scmp.ne.s32.totalorder %s240, %s243
      %p249 = scmp.eq.s32.totalorder %s26, 0
      %p250 = por %p248, %p249
      %p251 = scmp.ne.s32.totalorder %s240, %s243
      %p252 = scmp.eq.s32.totalorder %s31, 3
      %p253 = por %p251, %p252
      %p254 = scmp.ne.s32.totalorder %s243, %s244
      %p255 = scmp.eq.s32.totalorder %s31, 0
      %p256 = por %p254, %p255
      %p257 = scmp.ne.s32.totalorder %s243, %s244
      %p258 = scmp.eq.s32.totalorder %s32, 3
      %p259 = por %p257, %p258
      %p261 = scmp.ne.s32.totalorder %s244, %s260
      %p262 = scmp.eq.s32.totalorder %s32, 0
      %p263 = por %p261, %p262
      %p264 = scmp.le.s32.totalorder 1, %s26
      %p265 = scmp.lt.s32.totalorder %s26, 5
      %p266 = pnand %p264, %p265
      %p267 = pneg %p266
      // Predicated region
      $region9: #{tpu_custom_call.1} parent=5 // pred_check
        _
      $region10: #{tpu_custom_call.1} parent=5 // pred_check_branch
        %269 = sbr.rel (%p266) target = $region12
      $region11: #{tpu_custom_call.1} parent=5 // pred_region
        %s270 = ssub.s32 %s26, 1
        // Predicated region
        $region13: #{tpu_custom_call.1} parent=11 // pred_check
          %p271 = pneg %p125
        $region14: #{tpu_custom_call.1} parent=11 // pred_check_branch
          %273 = sbr.rel (%p271) target = $region16
        $region15: #{tpu_custom_call.1} parent=11 // pred_region
          %s275 = ssub.s32 1024, 1024
          %276 = vsyncadd [#allocation9], %s275
          %s277 = sshll.u32 [#allocation8], 4
          %s278 = int_to_ptr.vmem [resolvable:$true] %s277
          %283 = dma.hbm_to_vmem [thread:$0]  %s3, 1024, %s278, [#allocation9], 64, 64, 4
        $region16: #{tpu_custom_call.1} parent=11 // pred_fallthru
          _
        // Predicated region
        $region17: #{tpu_custom_call.1} parent=11 // pred_check
          %p284 = pneg %p146
        $region18: #{tpu_custom_call.1} parent=11 // pred_check_branch
          %286 = sbr.rel (%p284) target = $region20
        $region19: #{tpu_custom_call.1} parent=11 // pred_region
          %s288 = ssub.s32 1024, 1024
          %289 = vsyncadd [#allocation9], %s288
          %s290 = sshll.u32 [#allocation10], 4
          %s291 = int_to_ptr.vmem [resolvable:$true] %s290
          %296 = dma.hbm_to_vmem [thread:$0]  %s4, 1024, %s291, [#allocation9], 64, 64, 4
        $region20: #{tpu_custom_call.1} parent=11 // pred_fallthru
          _
        // Predicated region
        $region21: #{tpu_custom_call.1} parent=11 // pred_check
          %p297 = pneg %p167
        $region22: #{tpu_custom_call.1} parent=11 // pred_check_branch
          %299 = sbr.rel (%p297) target = $region24
        $region23: #{tpu_custom_call.1} parent=11 // pred_region
          _
        $region24: #{tpu_custom_call.1} parent=11 // pred_fallthru
          _
        // Predicated region
        $region25: #{tpu_custom_call.1} parent=11 // pred_check
          %p300 = pneg %p188
        $region26: #{tpu_custom_call.1} parent=11 // pred_check_branch
          %302 = sbr.rel (%p300) target = $region28
        $region27: #{tpu_custom_call.1} parent=11 // pred_region
          %s304 = ssub.s32 1024, 1024
          %305 = vsyncadd [#allocation12], %s304
          %s306 = sshll.u32 [#allocation11], 4
          %s307 = int_to_ptr.vmem [resolvable:$true] %s306
          %312 = dma.hbm_to_vmem [thread:$0]  %s6, 1024, %s307, [#allocation12], 64, 64, 4
        $region28: #{tpu_custom_call.1} parent=11 // pred_fallthru
          _
        // Predicated region
        $region29: #{tpu_custom_call.1} parent=11 // pred_check
          %p313 = pneg %p209
        $region30: #{tpu_custom_call.1} parent=11 // pred_check_branch
          %315 = sbr.rel (%p313) target = $region32
        $region31: #{tpu_custom_call.1} parent=11 // pred_region
          %s317 = ssub.s32 1024, 1024
          %318 = vsyncadd [#allocation12], %s317
          %s319 = sshll.u32 [#allocation13], 4
          %s320 = int_to_ptr.vmem [resolvable:$true] %s319
          %325 = dma.hbm_to_vmem [thread:$0]  %s7, 1024, %s320, [#allocation12], 64, 64, 4
        $region32: #{tpu_custom_call.1} parent=11 // pred_fallthru
          _
        // Predicated region
        $region33: #{tpu_custom_call.1} parent=11 // pred_check
          %p326 = pneg %p230
        $region34: #{tpu_custom_call.1} parent=11 // pred_check_branch
          %328 = sbr.rel (%p326) target = $region36
        $region35: #{tpu_custom_call.1} parent=11 // pred_region
          _
        $region36: #{tpu_custom_call.1} parent=11 // pred_fallthru
          _
      $region12: #{tpu_custom_call.1} parent=5 // pred_fallthru
        _
      %p329 = scmp.lt.s32.totalorder %s26, 4
      // Predicated region
      $region37: #{tpu_custom_call.1} parent=5 // pred_check
        %p330 = pneg %p329
      $region38: #{tpu_custom_call.1} parent=5 // pred_check_branch
        %332 = sbr.rel (%p330) target = $region40
      $region39: #{tpu_custom_call.1} parent=5 // pred_region
        // Predicated region
        $region41: #{tpu_custom_call.1} parent=39 // pred_check
          %p333 = pneg %p46
        $region42: #{tpu_custom_call.1} parent=39 // pred_check_branch
          %335 = sbr.rel (%p333) target = $region44
        $region43: #{tpu_custom_call.1} parent=39 // pred_region
          %s336 = sand.u32 %s36, 1
          %s337 = scalar_lea.sflag [#allocation3], %s336
          %s338 = sand.u32 %s36, 1
          %s339 = smul.addr %s338, 64
          %s340 = scalar_lea.vmem [#allocation2], %s339
          %s342 = ssub.s32 1024, 1024
          %343 = vsyncadd %s337, %s342
          %s344 = smul.addr %s26, 16
          %s345 = smul.addr %s344, 64
          %s346 = scalar_lea.hbm %s0, %s345
          %s347 = sshll.u32 %s340, 4
          %s348 = int_to_ptr.vmem [resolvable:$true] %s347
          %353 = dma.hbm_to_vmem [thread:$0]  %s346, 1024, %s348, %s337, 64, 64, 4
        $region44: #{tpu_custom_call.1} parent=39 // pred_fallthru
          _
        // Predicated region
        $region45: #{tpu_custom_call.1} parent=39 // pred_check
          %p354 = pneg %p72
        $region46: #{tpu_custom_call.1} parent=39 // pred_check_branch
          %356 = sbr.rel (%p354) target = $region48
        $region47: #{tpu_custom_call.1} parent=39 // pred_region
          %s357 = sand.u32 %s26, 1
          %s358 = scalar_lea.sflag [#allocation6], %s357
          %s359 = sand.u32 %s62, 1
          %s360 = smul.addr %s359, 8
          %s361 = scalar_lea.vmem [#allocation5], %s360
          %s363 = ssub.s32 128, 128
          %364 = vsyncadd %s358, %s363
          %s365 = smul.addr %s26, 2
          %s366 = smul.addr %s365, 64
          %s367 = scalar_lea.hbm %s1, %s366
          %s368 = sshll.u32 %s361, 4
          %s369 = int_to_ptr.vmem [resolvable:$true] %s368
          %374 = dma.hbm_to_vmem [thread:$0]  %s367, 128, %s369, %s358, 64, 64, 4
        $region48: #{tpu_custom_call.1} parent=39 // pred_fallthru
          _
        // Predicated region
        $region49: #{tpu_custom_call.1} parent=39 // pred_check
          %p375 = pneg %p98
        $region50: #{tpu_custom_call.1} parent=39 // pred_check_branch
          %377 = sbr.rel (%p375) target = $region52
        $region51: #{tpu_custom_call.1} parent=39 // pred_region
          %s378 = sand.u32 %s26, 1
          %s379 = scalar_lea.sflag [#allocation6], %s378
          %s380 = sand.u32 %s88, 1
          %s381 = smul.addr %s380, 64
          %s382 = scalar_lea.vmem [#allocation7], %s381
          %s384 = ssub.s32 1024, 1024
          %385 = vsyncadd %s379, %s384
          %s386 = smul.addr %s26, 16
          %s387 = smul.addr %s386, 64
          %s388 = scalar_lea.hbm %s2, %s387
          %s389 = sshll.u32 %s382, 4
          %s390 = int_to_ptr.vmem [resolvable:$true] %s389
          %395 = dma.hbm_to_vmem [thread:$0]  %s388, 1024, %s390, %s379, 64, 64, 4
        $region52: #{tpu_custom_call.1} parent=39 // pred_fallthru
          _
      $region40: #{tpu_custom_call.1} parent=5 // pred_fallthru
        _
      %p396 = scmp.le.s32.totalorder 1, %s26
      %p397 = scmp.lt.s32.totalorder %s26, 5
      %p398 = pnand %p396, %p397
      %p399 = pneg %p398
      // Predicated region
      $region53: #{tpu_custom_call.1} parent=5 // pred_check
        _
      $region54: #{tpu_custom_call.1} parent=5 // pred_check_branch
        %401 = sbr.rel (%p398) target = $region56
      $region55: #{tpu_custom_call.1} parent=5 // pred_region
        %s402 = ssub.s32 %s26, 1
        %s403 = sand.u32 %s39, 1
        %s404 = scalar_lea.sflag [#allocation3], %s403
        %s405 = sand.u32 %s39, 1
        %s406 = smul.addr %s405, 64
        %s407 = scalar_lea.vmem [#allocation2], %s406
        // Predicated region
        $region57: #{tpu_custom_call.1} parent=55 // pred_check
          %p408 = pneg %p52
        $region58: #{tpu_custom_call.1} parent=55 // pred_check_branch
          %410 = sbr.rel (%p408) target = $region60
        $region59: #{tpu_custom_call.1} parent=55 // pred_region
          %411 = dma.done %s404, 1024
        $region60: #{tpu_custom_call.1} parent=55 // pred_fallthru
          _
        %s412 = sand.u32 %s31, 1
        %s413 = scalar_lea.sflag [#allocation6], %s412
        %s414 = sand.u32 %s65, 1
        %s415 = smul.addr %s414, 8
        %s416 = scalar_lea.vmem [#allocation5], %s415
        // Predicated region
        $region61: #{tpu_custom_call.1} parent=55 // pred_check
          %p417 = pneg %p78
        $region62: #{tpu_custom_call.1} parent=55 // pred_check_branch
          %419 = sbr.rel (%p417) target = $region64
        $region63: #{tpu_custom_call.1} parent=55 // pred_region
          %420 = dma.done %s413, 128
        $region64: #{tpu_custom_call.1} parent=55 // pred_fallthru
          _
        %s421 = sand.u32 %s31, 1
        %s422 = scalar_lea.sflag [#allocation6], %s421
        %s423 = sand.u32 %s91, 1
        %s424 = smul.addr %s423, 64
        %s425 = scalar_lea.vmem [#allocation7], %s424
        // Predicated region
        $region65: #{tpu_custom_call.1} parent=55 // pred_check
          %p426 = pneg %p104
        $region66: #{tpu_custom_call.1} parent=55 // pred_check_branch
          %428 = sbr.rel (%p426) target = $region68
        $region67: #{tpu_custom_call.1} parent=55 // pred_region
          %429 = dma.done %s422, 1024
        $region68: #{tpu_custom_call.1} parent=55 // pred_fallthru
          _
        // Predicated region
        $region69: #{tpu_custom_call.1} parent=55 // pred_check
          %p430 = pneg %p125
        $region70: #{tpu_custom_call.1} parent=55 // pred_check_branch
          %432 = sbr.rel (%p430) target = $region72
        $region71: #{tpu_custom_call.1} parent=55 // pred_region
          %433 = dma.done [#allocation9], 1024
        $region72: #{tpu_custom_call.1} parent=55 // pred_fallthru
          _
        // Predicated region
        $region73: #{tpu_custom_call.1} parent=55 // pred_check
          %p434 = pneg %p146
        $region74: #{tpu_custom_call.1} parent=55 // pred_check_branch
          %436 = sbr.rel (%p434) target = $region76
        $region75: #{tpu_custom_call.1} parent=55 // pred_region
          %437 = dma.done [#allocation9], 1024
        $region76: #{tpu_custom_call.1} parent=55 // pred_fallthru
          _
        // Predicated region
        $region77: #{tpu_custom_call.1} parent=55 // pred_check
          %p438 = pneg %p188
        $region78: #{tpu_custom_call.1} parent=55 // pred_check_branch
          %440 = sbr.rel (%p438) target = $region80
        $region79: #{tpu_custom_call.1} parent=55 // pred_region
          %441 = dma.done [#allocation12], 1024
        $region80: #{tpu_custom_call.1} parent=55 // pred_fallthru
          _
        // Predicated region
        $region81: #{tpu_custom_call.1} parent=55 // pred_check
          %p442 = pneg %p209
        $region82: #{tpu_custom_call.1} parent=55 // pred_check_branch
          %444 = sbr.rel (%p442) target = $region84
        $region83: #{tpu_custom_call.1} parent=55 // pred_region
          %445 = dma.done [#allocation12], 1024
        $region84: #{tpu_custom_call.1} parent=55 // pred_fallthru
          _
        %s446 = sand.u32 %s39, 1
        %s447 = scalar_lea.sflag [#allocation3], %s446
        %s448 = sand.u32 %s39, 1
        %s449 = smul.addr %s448, 64
        %s450 = scalar_lea.vmem [#allocation2], %s449
        %p451 = pneg %p52
        %p452 = pneg %p49
        %s453 = sand.u32 %s31, 1
        %s454 = scalar_lea.sflag [#allocation6], %s453
        %s455 = sand.u32 %s65, 1
        %s456 = smul.addr %s455, 8
        %s457 = scalar_lea.vmem [#allocation5], %s456
        %p458 = pneg %p78
        %p459 = pneg %p75
        %s460 = sand.u32 %s31, 1
        %s461 = scalar_lea.sflag [#allocation6], %s460
        %s462 = sand.u32 %s91, 1
        %s463 = smul.addr %s462, 64
        %s464 = scalar_lea.vmem [#allocation7], %s463
        %p465 = pneg %p104
        %p466 = pneg %p101
        %p467 = pneg %p125
        %p468 = pneg %p122
        %p469 = pneg %p146
        %p470 = pneg %p143
        %p471 = pneg %p167
        %p472 = pneg %p164
        %p473 = pneg %p188
        %p474 = pneg %p185
        %p475 = pneg %p209
        %p476 = pneg %p206
        %p477 = pneg %p230
        %p478 = pneg %p227
        %p479 = pneg %p256
        %p480 = pneg %p253
        %s481 = sand.u32 %s243, 1
        %s482 = scalar_lea.sflag [#allocation4], %s481
        %s483 = sand.u32 %s243, 1
        %s484 = smul.addr %s483, 16
        %s485 = scalar_lea.vmem [#allocation14], %s484
        %v487 = vld [vmem:[%s425] sm:$0xf]
        %v488 = vld [vmem:[%s425 + $0x4] sm:$0xf]
        %v489 = vld [vmem:[%s425 + $0x8] sm:$0xf]
        %v490 = vld [vmem:[%s425 + $0xc] sm:$0xf]
        %v491 = vld [vmem:[%s425 + $0x10] sm:$0xf]
        %v492 = vld [vmem:[%s425 + $0x14] sm:$0xf]
        %v493 = vld [vmem:[%s425 + $0x18] sm:$0xf]
        %v494 = vld [vmem:[%s425 + $0x1c] sm:$0xf]
        %v495 = vld [vmem:[%s425 + $0x20] sm:$0xf]
        %v496 = vld [vmem:[%s425 + $0x24] sm:$0xf]
        %v497 = vld [vmem:[%s425 + $0x28] sm:$0xf]
        %v498 = vld [vmem:[%s425 + $0x2c] sm:$0xf]
        %v499 = vld [vmem:[%s425 + $0x30] sm:$0xf]
        %v500 = vld [vmem:[%s425 + $0x34] sm:$0xf]
        %v501 = vld [vmem:[%s425 + $0x38] sm:$0xf]
        %v502 = vld [vmem:[%s425 + $0x3c] sm:$0xf]
        %v503 = vld [vmem:[%s407] sm:$0xf]
        %v504 = vld [vmem:[%s407 + $0x4] sm:$0xf]
        %v505 = vld [vmem:[%s407 + $0x8] sm:$0xf]
        %v506 = vld [vmem:[%s407 + $0xc] sm:$0xf]
        %v507 = vld [vmem:[%s407 + $0x10] sm:$0xf]
        %v508 = vld [vmem:[%s407 + $0x14] sm:$0xf]
        %v509 = vld [vmem:[%s407 + $0x18] sm:$0xf]
        %v510 = vld [vmem:[%s407 + $0x1c] sm:$0xf]
        %v511 = vld [vmem:[%s407 + $0x20] sm:$0xf]
        %v512 = vld [vmem:[%s407 + $0x24] sm:$0xf]
        %v513 = vld [vmem:[%s407 + $0x28] sm:$0xf]
        %v514 = vld [vmem:[%s407 + $0x2c] sm:$0xf]
        %v515 = vld [vmem:[%s407 + $0x30] sm:$0xf]
        %v516 = vld [vmem:[%s407 + $0x34] sm:$0xf]
        %v517 = vld [vmem:[%s407 + $0x38] sm:$0xf]
        %v518 = vld [vmem:[%s407 + $0x3c] sm:$0xf]
        %v519 = vld [vmem:[#allocation8] sm:$0xf]
        %v520 = vld [vmem:[#allocation8 + $0x4] sm:$0xf]
        %v521 = vld [vmem:[#allocation8 + $0x8] sm:$0xf]
        %v522 = vld [vmem:[#allocation8 + $0xc] sm:$0xf]
        %v523 = vld [vmem:[#allocation8 + $0x10] sm:$0xf]
        %v524 = vld [vmem:[#allocation8 + $0x14] sm:$0xf]
        %v525 = vld [vmem:[#allocation8 + $0x18] sm:$0xf]
        %v526 = vld [vmem:[#allocation8 + $0x1c] sm:$0xf]
        %v527 = vld [vmem:[#allocation8 + $0x20] sm:$0xf]
        %v528 = vld [vmem:[#allocation8 + $0x24] sm:$0xf]
        %v529 = vld [vmem:[#allocation8 + $0x28] sm:$0xf]
        %v530 = vld [vmem:[#allocation8 + $0x2c] sm:$0xf]
        %v531 = vld [vmem:[#allocation8 + $0x30] sm:$0xf]
        %v532 = vld [vmem:[#allocation8 + $0x34] sm:$0xf]
        %v533 = vld [vmem:[#allocation8 + $0x38] sm:$0xf]
        %v534 = vld [vmem:[#allocation8 + $0x3c] sm:$0xf]
        %v535 = vld [vmem:[#allocation10] sm:$0xf]
        %v536 = vld [vmem:[#allocation10 + $0x4] sm:$0xf]
        %v537 = vld [vmem:[#allocation10 + $0x8] sm:$0xf]
        %v538 = vld [vmem:[#allocation10 + $0xc] sm:$0xf]
        %v539 = vld [vmem:[#allocation10 + $0x10] sm:$0xf]
        %v540 = vld [vmem:[#allocation10 + $0x14] sm:$0xf]
        %v541 = vld [vmem:[#allocation10 + $0x18] sm:$0xf]
        %v542 = vld [vmem:[#allocation10 + $0x1c] sm:$0xf]
        %v543 = vld [vmem:[#allocation10 + $0x20] sm:$0xf]
        %v544 = vld [vmem:[#allocation10 + $0x24] sm:$0xf]
        %v545 = vld [vmem:[#allocation10 + $0x28] sm:$0xf]
        %v546 = vld [vmem:[#allocation10 + $0x2c] sm:$0xf]
        %v547 = vld [vmem:[#allocation10 + $0x30] sm:$0xf]
        %v548 = vld [vmem:[#allocation10 + $0x34] sm:$0xf]
        %v549 = vld [vmem:[#allocation10 + $0x38] sm:$0xf]
        %v550 = vld [vmem:[#allocation10 + $0x3c] sm:$0xf]
        %v551 = vld [vmem:[%s5] sm:$0x1]
        %v568 = vunpack.c.l.b16 %v503
        %v569 = vunpack.c.l.b16 %v504
        %v570 = vunpack.c.l.b16 %v505
        %v571 = vunpack.c.l.b16 %v506
        %v572 = vunpack.c.l.b16 %v507
        %v573 = vunpack.c.l.b16 %v508
        %v574 = vunpack.c.l.b16 %v509
        %v575 = vunpack.c.l.b16 %v510
        %v576 = vunpack.c.l.b16 %v511
        %v577 = vunpack.c.l.b16 %v512
        %v578 = vunpack.c.l.b16 %v513
        %v579 = vunpack.c.l.b16 %v514
        %v580 = vunpack.c.l.b16 %v515
        %v581 = vunpack.c.l.b16 %v516
        %v582 = vunpack.c.l.b16 %v517
        %v583 = vunpack.c.l.b16 %v518
        %v584 = vpack.c.b16 %v569, %v568
        %v585 = vpack.c.b16 %v571, %v570
        %v586 = vpack.c.b16 %v573, %v572
        %v587 = vpack.c.b16 %v575, %v574
        %v588 = vpack.c.b16 %v577, %v576
        %v589 = vpack.c.b16 %v579, %v578
        %v590 = vpack.c.b16 %v581, %v580
        %v591 = vpack.c.b16 %v583, %v582
        %v616 = vunpack.c.l.b16 %v487
        %v617 = vunpack.c.l.b16 %v488
        %v618 = vunpack.c.l.b16 %v489
        %v619 = vunpack.c.l.b16 %v490
        %v620 = vunpack.c.l.b16 %v491
        %v621 = vunpack.c.l.b16 %v492
        %v622 = vunpack.c.l.b16 %v493
        %v623 = vunpack.c.l.b16 %v494
        %v624 = vunpack.c.l.b16 %v495
        %v625 = vunpack.c.l.b16 %v496
        %v626 = vunpack.c.l.b16 %v497
        %v627 = vunpack.c.l.b16 %v498
        %v628 = vunpack.c.l.b16 %v499
        %v629 = vunpack.c.l.b16 %v500
        %v630 = vunpack.c.l.b16 %v501
        %v631 = vunpack.c.l.b16 %v502
        %v632 = vpack.c.b16 %v617, %v616
        %v633 = vpack.c.b16 %v619, %v618
        %v634 = vpack.c.b16 %v621, %v620
        %v635 = vpack.c.b16 %v623, %v622
        %v636 = vpack.c.b16 %v625, %v624
        %v637 = vpack.c.b16 %v627, %v626
        %v638 = vpack.c.b16 %v629, %v628
        %v639 = vpack.c.b16 %v631, %v630
        %648 = vmatprep.subr.bf16.mxu0 0
        %649 = vmatpush1.bf16.msra.mxu0 %v632
        %650 = vmatprep.subr.bf16.mxu0 0
        %651 = vmatpush1.bf16.msra.mxu0 %v633
        %652 = vmatprep.subr.bf16.mxu0 0
        %653 = vmatpush1.bf16.msra.mxu0 %v634
        %654 = vmatprep.subr.bf16.mxu0 0
        %655 = vmatpush1.bf16.msra.mxu0 %v635
        %656 = vmatprep.subr.bf16.mxu0 0
        %657 = vmatpush1.bf16.msra.mxu0 %v636
        %658 = vmatprep.subr.bf16.mxu0 0
        %659 = vmatpush1.bf16.msra.mxu0 %v637
        %660 = vmatprep.subr.bf16.mxu0 0
        %661 = vmatpush1.bf16.msra.mxu0 %v638
        %662 = vmatprep.subr.bf16.mxu0 0
        %663 = vmatpush1.bf16.msra.mxu0 %v639
        %664 = vmatprep.subr.bf16.mxu0 0
        %665 = vmatpush1.bf16.msra.mxu0 0
        %666 = vmatprep.subr.bf16.mxu0 0
        %667 = vmatpush1.bf16.msra.mxu0 0
        %668 = vmatprep.subr.bf16.mxu0 0
        %669 = vmatpush1.bf16.msra.mxu0 0
        %670 = vmatprep.subr.bf16.mxu0 0
        %671 = vmatpush1.bf16.msra.mxu0 0
        %672 = vmatprep.subr.bf16.mxu0 0
        %673 = vmatpush1.bf16.msra.mxu0 0
        %674 = vmatprep.subr.bf16.mxu0 0
        %675 = vmatpush1.bf16.msra.mxu0 0
        %676 = vmatprep.subr.bf16.mxu0 0
        %677 = vmatpush1.bf16.msra.mxu0 0
        %678 = vmatprep.subr.bf16.mxu0 0
        %679 = vmatpush1.bf16.msra.mxu0 0
        %680 = vmatprep.mubr.bf16.mxu0 0
        %681 = vmatmul.mubr.bf16.gmra.mrb[0].mxu0 %v584
        %v682 = vpop.f32.mrb[0].mxu0
        %v683 = vadd.f32 0.0, %v682
        %v684 = vpop.f32.mrb[0].mxu0
        %v685 = vpop.f32.mrb[0].mxu0
        %v686 = vadd.f32 0.0, %v685
        %v687 = vpop.f32.mrb[0].mxu0
        %688 = vmatprep.mubr.bf16.mxu0 0
        %689 = vmatmul.mubr.bf16.gmra.mrb[0].mxu0 %v585
        %v690 = vpop.f32.mrb[0].mxu0
        %v691 = vadd.f32 0.0, %v690
        %v692 = vpop.f32.mrb[0].mxu0
        %v693 = vpop.f32.mrb[0].mxu0
        %v694 = vadd.f32 0.0, %v693
        %v695 = vpop.f32.mrb[0].mxu0
        %696 = vmatprep.mubr.bf16.mxu0 0
        %697 = vmatmul.mubr.bf16.gmra.mrb[0].mxu0 %v586
        %v698 = vpop.f32.mrb[0].mxu0
        %v699 = vadd.f32 0.0, %v698
        %v700 = vpop.f32.mrb[0].mxu0
        %v701 = vpop.f32.mrb[0].mxu0
        %v702 = vadd.f32 0.0, %v701
        %v703 = vpop.f32.mrb[0].mxu0
        %704 = vmatprep.mubr.bf16.mxu0 0
        %705 = vmatmul.mubr.bf16.gmra.mrb[0].mxu0 %v587
        %v706 = vpop.f32.mrb[0].mxu0
        %v707 = vadd.f32 0.0, %v706
        %v708 = vpop.f32.mrb[0].mxu0
        %v709 = vpop.f32.mrb[0].mxu0
        %v710 = vadd.f32 0.0, %v709
        %v711 = vpop.f32.mrb[0].mxu0
        %712 = vmatprep.mubr.bf16.mxu0 0
        %713 = vmatmul.mubr.bf16.gmra.mrb[0].mxu0 %v588
        %v714 = vpop.f32.mrb[0].mxu0
        %v715 = vadd.f32 0.0, %v714
        %v716 = vpop.f32.mrb[0].mxu0
        %v717 = vpop.f32.mrb[0].mxu0
        %v718 = vadd.f32 0.0, %v717
        %v719 = vpop.f32.mrb[0].mxu0
        %720 = vmatprep.mubr.bf16.mxu0 0
        %721 = vmatmul.mubr.bf16.gmra.mrb[0].mxu0 %v589
        %v722 = vpop.f32.mrb[0].mxu0
        %v723 = vadd.f32 0.0, %v722
        %v724 = vpop.f32.mrb[0].mxu0
        %v725 = vpop.f32.mrb[0].mxu0
        %v726 = vadd.f32 0.0, %v725
        %v727 = vpop.f32.mrb[0].mxu0
        %728 = vmatprep.mubr.bf16.mxu0 0
        %729 = vmatmul.mubr.bf16.gmra.mrb[0].mxu0 %v590
        %v730 = vpop.f32.mrb[0].mxu0
        %v731 = vadd.f32 0.0, %v730
        %v732 = vpop.f32.mrb[0].mxu0
        %v733 = vpop.f32.mrb[0].mxu0
        %v734 = vadd.f32 0.0, %v733
        %v735 = vpop.f32.mrb[0].mxu0
        %736 = vmatprep.mubr.bf16.mxu0 0
        %737 = vmatmul.mubr.bf16.gmra.mrb[0].mxu0 %v591
        %v738 = vpop.f32.mrb[0].mxu0
        %v739 = vadd.f32 0.0, %v738
        %v740 = vpop.f32.mrb[0].mxu0
        %v741 = vpop.f32.mrb[0].mxu0
        %v742 = vadd.f32 0.0, %v741
        %v743 = vpop.f32.mrb[0].mxu0
        %744 = vdwg.mxu0
        %v745 = vpack.c.bf16 %v686, %v683
        %v746 = vpack.c.bf16 %v694, %v691
        %v747 = vpack.c.bf16 %v702, %v699
        %v748 = vpack.c.bf16 %v710, %v707
        %v749 = vpack.c.bf16 %v718, %v715
        %v750 = vpack.c.bf16 %v726, %v723
        %v751 = vpack.c.bf16 %v734, %v731
        %v752 = vpack.c.bf16 %v742, %v739
        %v769 = vunpack.c.l.b16 %v535
        %v770 = vunpack.c.l.b16 %v536
        %v771 = vunpack.c.l.b16 %v537
        %v772 = vunpack.c.l.b16 %v538
        %v773 = vunpack.c.l.b16 %v539
        %v774 = vunpack.c.l.b16 %v540
        %v775 = vunpack.c.l.b16 %v541
        %v776 = vunpack.c.l.b16 %v542
        %v777 = vunpack.c.l.b16 %v543
        %v778 = vunpack.c.l.b16 %v544
        %v779 = vunpack.c.l.b16 %v545
        %v780 = vunpack.c.l.b16 %v546
        %v781 = vunpack.c.l.b16 %v547
        %v782 = vunpack.c.l.b16 %v548
        %v783 = vunpack.c.l.b16 %v549
        %v784 = vunpack.c.l.b16 %v550
        %v785 = vpack.c.b16 %v770, %v769
        %v786 = vpack.c.b16 %v772, %v771
        %v787 = vpack.c.b16 %v774, %v773
        %v788 = vpack.c.b16 %v776, %v775
        %v789 = vpack.c.b16 %v778, %v777
        %v790 = vpack.c.b16 %v780, %v779
        %v791 = vpack.c.b16 %v782, %v781
        %v792 = vpack.c.b16 %v784, %v783
        %801 = vmatprep.subr.bf16.mxu0 0
        %802 = vmatpush1.bf16.msra.mxu0 %v785
        %803 = vmatprep.subr.bf16.mxu0 0
        %804 = vmatpush1.bf16.msra.mxu0 %v786
        %805 = vmatprep.subr.bf16.mxu0 0
        %806 = vmatpush1.bf16.msra.mxu0 %v787
        %807 = vmatprep.subr.bf16.mxu0 0
        %808 = vmatpush1.bf16.msra.mxu0 %v788
        %809 = vmatprep.subr.bf16.mxu0 0
        %810 = vmatpush1.bf16.msra.mxu0 %v789
        %811 = vmatprep.subr.bf16.mxu0 0
        %812 = vmatpush1.bf16.msra.mxu0 %v790
        %813 = vmatprep.subr.bf16.mxu0 0
        %814 = vmatpush1.bf16.msra.mxu0 %v791
        %815 = vmatprep.subr.bf16.mxu0 0
        %816 = vmatpush1.bf16.msra.mxu0 %v792
        %817 = vmatprep.subr.bf16.mxu0 0
        %818 = vmatpush1.bf16.msra.mxu0 0
        %819 = vmatprep.subr.bf16.mxu0 0
        %820 = vmatpush1.bf16.msra.mxu0 0
        %821 = vmatprep.subr.bf16.mxu0 0
        %822 = vmatpush1.bf16.msra.mxu0 0
        %823 = vmatprep.subr.bf16.mxu0 0
        %824 = vmatpush1.bf16.msra.mxu0 0
        %825 = vmatprep.subr.bf16.mxu0 0
        %826 = vmatpush1.bf16.msra.mxu0 0
        %827 = vmatprep.subr.bf16.mxu0 0
        %828 = vmatpush1.bf16.msra.mxu0 0
        %829 = vmatprep.subr.bf16.mxu0 0
        %830 = vmatpush1.bf16.msra.mxu0 0
        %831 = vmatprep.subr.bf16.mxu0 0
        %832 = vmatpush1.bf16.msra.mxu0 0
        %833 = vmatprep.mubr.bf16.mxu0 0
        %834 = vmatmul.mubr.bf16.gmra.mrb[0].mxu0 %v632
        %v835 = vpop.f32.mrb[0].mxu0
        %v836 = vadd.f32 0.0, %v835
        %v837 = vpop.f32.mrb[0].mxu0
        %v838 = vpop.f32.mrb[0].mxu0
        %v839 = vadd.f32 0.0, %v838
        %v840 = vpop.f32.mrb[0].mxu0
        %841 = vmatprep.mubr.bf16.mxu0 0
        %842 = vmatmul.mubr.bf16.gmra.mrb[0].mxu0 %v633
        %v843 = vpop.f32.mrb[0].mxu0
        %v844 = vadd.f32 0.0, %v843
        %v845 = vpop.f32.mrb[0].mxu0
        %v846 = vpop.f32.mrb[0].mxu0
        %v847 = vadd.f32 0.0, %v846
        %v848 = vpop.f32.mrb[0].mxu0
        %849 = vmatprep.mubr.bf16.mxu0 0
        %850 = vmatmul.mubr.bf16.gmra.mrb[0].mxu0 %v634
        %v851 = vpop.f32.mrb[0].mxu0
        %v852 = vadd.f32 0.0, %v851
        %v853 = vpop.f32.mrb[0].mxu0
        %v854 = vpop.f32.mrb[0].mxu0
        %v855 = vadd.f32 0.0, %v854
        %v856 = vpop.f32.mrb[0].mxu0
        %857 = vmatprep.mubr.bf16.mxu0 0
        %858 = vmatmul.mubr.bf16.gmra.mrb[0].mxu0 %v635
        %v859 = vpop.f32.mrb[0].mxu0
        %v860 = vadd.f32 0.0, %v859
        %v861 = vpop.f32.mrb[0].mxu0
        %v862 = vpop.f32.mrb[0].mxu0
        %v863 = vadd.f32 0.0, %v862
        %v864 = vpop.f32.mrb[0].mxu0
        %865 = vmatprep.mubr.bf16.mxu0 0
        %866 = vmatmul.mubr.bf16.gmra.mrb[0].mxu0 %v636
        %v867 = vpop.f32.mrb[0].mxu0
        %v868 = vadd.f32 0.0, %v867
        %v869 = vpop.f32.mrb[0].mxu0
        %v870 = vpop.f32.mrb[0].mxu0
        %v871 = vadd.f32 0.0, %v870
        %v872 = vpop.f32.mrb[0].mxu0
        %873 = vmatprep.mubr.bf16.mxu0 0
        %874 = vmatmul.mubr.bf16.gmra.mrb[0].mxu0 %v637
        %v875 = vpop.f32.mrb[0].mxu0
        %v876 = vadd.f32 0.0, %v875
        %v877 = vpop.f32.mrb[0].mxu0
        %v878 = vpop.f32.mrb[0].mxu0
        %v879 = vadd.f32 0.0, %v878
        %v880 = vpop.f32.mrb[0].mxu0
        %881 = vmatprep.mubr.bf16.mxu0 0
        %882 = vmatmul.mubr.bf16.gmra.mrb[0].mxu0 %v638
        %v883 = vpop.f32.mrb[0].mxu0
        %v884 = vadd.f32 0.0, %v883
        %v885 = vpop.f32.mrb[0].mxu0
        %v886 = vpop.f32.mrb[0].mxu0
        %v887 = vadd.f32 0.0, %v886
        %v888 = vpop.f32.mrb[0].mxu0
        %889 = vmatprep.mubr.bf16.mxu0 0
        %890 = vmatmul.mubr.bf16.gmra.mrb[0].mxu0 %v639
        %v891 = vpop.f32.mrb[0].mxu0
        %v892 = vadd.f32 0.0, %v891
        %v893 = vpop.f32.mrb[0].mxu0
        %v894 = vpop.f32.mrb[0].mxu0
        %v895 = vadd.f32 0.0, %v894
        %v896 = vpop.f32.mrb[0].mxu0
        %897 = vdwg.mxu0
        %v914 = vunpack.c.l.b16 %v519
        %v915 = vunpack.c.l.b16 %v520
        %v916 = vunpack.c.l.b16 %v521
        %v917 = vunpack.c.l.b16 %v522
        %v918 = vunpack.c.l.b16 %v523
        %v919 = vunpack.c.l.b16 %v524
        %v920 = vunpack.c.l.b16 %v525
        %v921 = vunpack.c.l.b16 %v526
        %v922 = vunpack.c.l.b16 %v527
        %v923 = vunpack.c.l.b16 %v528
        %v924 = vunpack.c.l.b16 %v529
        %v925 = vunpack.c.l.b16 %v530
        %v926 = vunpack.c.l.b16 %v531
        %v927 = vunpack.c.l.b16 %v532
        %v928 = vunpack.c.l.b16 %v533
        %v929 = vunpack.c.l.b16 %v534
        %v930 = vpack.c.b16 %v915, %v914
        %v931 = vpack.c.b16 %v917, %v916
        %v932 = vpack.c.b16 %v919, %v918
        %v933 = vpack.c.b16 %v921, %v920
        %v934 = vpack.c.b16 %v923, %v922
        %v935 = vpack.c.b16 %v925, %v924
        %v936 = vpack.c.b16 %v927, %v926
        %v937 = vpack.c.b16 %v929, %v928
        %946 = vmatprep.subr.bf16.mxu0 0
        %947 = vmatpush1.bf16.msra.mxu0 %v930
        %948 = vmatprep.subr.bf16.mxu0 0
        %949 = vmatpush1.bf16.msra.mxu0 %v931
        %950 = vmatprep.subr.bf16.mxu0 0
        %951 = vmatpush1.bf16.msra.mxu0 %v932
        %952 = vmatprep.subr.bf16.mxu0 0
        %953 = vmatpush1.bf16.msra.mxu0 %v933
        %954 = vmatprep.subr.bf16.mxu0 0
        %955 = vmatpush1.bf16.msra.mxu0 %v934
        %956 = vmatprep.subr.bf16.mxu0 0
        %957 = vmatpush1.bf16.msra.mxu0 %v935
        %958 = vmatprep.subr.bf16.mxu0 0
        %959 = vmatpush1.bf16.msra.mxu0 %v936
        %960 = vmatprep.subr.bf16.mxu0 0
        %961 = vmatpush1.bf16.msra.mxu0 %v937
        %962 = vmatprep.subr.bf16.mxu0 0
        %963 = vmatpush1.bf16.msra.mxu0 0
        %964 = vmatprep.subr.bf16.mxu0 0
        %965 = vmatpush1.bf16.msra.mxu0 0
        %966 = vmatprep.subr.bf16.mxu0 0
        %967 = vmatpush1.bf16.msra.mxu0 0
        %968 = vmatprep.subr.bf16.mxu0 0
        %969 = vmatpush1.bf16.msra.mxu0 0
        %970 = vmatprep.subr.bf16.mxu0 0
        %971 = vmatpush1.bf16.msra.mxu0 0
        %972 = vmatprep.subr.bf16.mxu0 0
        %973 = vmatpush1.bf16.msra.mxu0 0
        %974 = vmatprep.subr.bf16.mxu0 0
        %975 = vmatpush1.bf16.msra.mxu0 0
        %976 = vmatprep.subr.bf16.mxu0 0
        %977 = vmatpush1.bf16.msra.mxu0 0
        %978 = vmatprep.mubr.bf16.mxu0 0
        %979 = vmatmul.mubr.bf16.gmra.mrb[0].mxu0 %v745
        %v980 = vpop.f32.mrb[0].mxu0
        %v981 = vadd.f32 %v836, %v980
        %v982 = vpop.f32.mrb[0].mxu0
        %v983 = vpop.f32.mrb[0].mxu0
        %v984 = vadd.f32 %v839, %v983
        %v985 = vpop.f32.mrb[0].mxu0
        %986 = vmatprep.mubr.bf16.mxu0 0
        %987 = vmatmul.mubr.bf16.gmra.mrb[0].mxu0 %v746
        %v988 = vpop.f32.mrb[0].mxu0
        %v989 = vadd.f32 %v844, %v988
        %v990 = vpop.f32.mrb[0].mxu0
        %v991 = vpop.f32.mrb[0].mxu0
        %v992 = vadd.f32 %v847, %v991
        %v993 = vpop.f32.mrb[0].mxu0
        %994 = vmatprep.mubr.bf16.mxu0 0
        %995 = vmatmul.mubr.bf16.gmra.mrb[0].mxu0 %v747
        %v996 = vpop.f32.mrb[0].mxu0
        %v997 = vadd.f32 %v852, %v996
        %v998 = vpop.f32.mrb[0].mxu0
        %v999 = vpop.f32.mrb[0].mxu0
        %v1000 = vadd.f32 %v855, %v999
        %v1001 = vpop.f32.mrb[0].mxu0
        %1002 = vmatprep.mubr.bf16.mxu0 0
        %1003 = vmatmul.mubr.bf16.gmra.mrb[0].mxu0 %v748
        %v1004 = vpop.f32.mrb[0].mxu0
        %v1005 = vadd.f32 %v860, %v1004
        %v1006 = vpop.f32.mrb[0].mxu0
        %v1007 = vpop.f32.mrb[0].mxu0
        %v1008 = vadd.f32 %v863, %v1007
        %v1009 = vpop.f32.mrb[0].mxu0
        %1010 = vmatprep.mubr.bf16.mxu0 0
        %1011 = vmatmul.mubr.bf16.gmra.mrb[0].mxu0 %v749
        %v1012 = vpop.f32.mrb[0].mxu0
        %v1013 = vadd.f32 %v868, %v1012
        %v1014 = vpop.f32.mrb[0].mxu0
        %v1015 = vpop.f32.mrb[0].mxu0
        %v1016 = vadd.f32 %v871, %v1015
        %v1017 = vpop.f32.mrb[0].mxu0
        %1018 = vmatprep.mubr.bf16.mxu0 0
        %1019 = vmatmul.mubr.bf16.gmra.mrb[0].mxu0 %v750
        %v1020 = vpop.f32.mrb[0].mxu0
        %v1021 = vadd.f32 %v876, %v1020
        %v1022 = vpop.f32.mrb[0].mxu0
        %v1023 = vpop.f32.mrb[0].mxu0
        %v1024 = vadd.f32 %v879, %v1023
        %v1025 = vpop.f32.mrb[0].mxu0
        %1026 = vmatprep.mubr.bf16.mxu0 0
        %1027 = vmatmul.mubr.bf16.gmra.mrb[0].mxu0 %v751
        %v1028 = vpop.f32.mrb[0].mxu0
        %v1029 = vadd.f32 %v884, %v1028
        %v1030 = vpop.f32.mrb[0].mxu0
        %v1031 = vpop.f32.mrb[0].mxu0
        %v1032 = vadd.f32 %v887, %v1031
        %v1033 = vpop.f32.mrb[0].mxu0
        %1034 = vmatprep.mubr.bf16.mxu0 0
        %1035 = vmatmul.mubr.bf16.gmra.mrb[0].mxu0 %v752
        %v1036 = vpop.f32.mrb[0].mxu0
        %v1037 = vadd.f32 %v892, %v1036
        %v1038 = vpop.f32.mrb[0].mxu0
        %v1039 = vpop.f32.mrb[0].mxu0
        %v1040 = vadd.f32 %v895, %v1039
        %v1041 = vpop.f32.mrb[0].mxu0
        %1042 = vdwg.mxu0
        %v1044 = vlaneseq
        %v1045 = vshrl.u32 %v1044, 7
        %v1046 = vsub.s32 0, %v1045
        %v1047 = vrot.slane %v551, %v1046
        %v1049 = vadd.f32 %v981, %v1047
        %v1050 = vadd.f32 %v984, %v1047
        %v1051 = vadd.f32 %v989, %v1047
        %v1052 = vadd.f32 %v992, %v1047
        %v1053 = vadd.f32 %v997, %v1047
        %v1054 = vadd.f32 %v1000, %v1047
        %v1055 = vadd.f32 %v1005, %v1047
        %v1056 = vadd.f32 %v1008, %v1047
        %v1057 = vadd.f32 %v1013, %v1047
        %v1058 = vadd.f32 %v1016, %v1047
        %v1059 = vadd.f32 %v1021, %v1047
        %v1060 = vadd.f32 %v1024, %v1047
        %v1061 = vadd.f32 %v1029, %v1047
        %v1062 = vadd.f32 %v1032, %v1047
        %v1063 = vadd.f32 %v1037, %v1047
        %v1064 = vadd.f32 %v1040, %v1047
        %v1065 = vmax.f32 %v1049, 0.0
        %v1066 = vmax.f32 %v1050, 0.0
        %v1067 = vmax.f32 %v1051, 0.0
        %v1068 = vmax.f32 %v1052, 0.0
        %v1069 = vmax.f32 %v1053, 0.0
        %v1070 = vmax.f32 %v1054, 0.0
        %v1071 = vmax.f32 %v1055, 0.0
        %v1072 = vmax.f32 %v1056, 0.0
        %v1073 = vmax.f32 %v1057, 0.0
        %v1074 = vmax.f32 %v1058, 0.0
        %v1075 = vmax.f32 %v1059, 0.0
        %v1076 = vmax.f32 %v1060, 0.0
        %v1077 = vmax.f32 %v1061, 0.0
        %v1078 = vmax.f32 %v1062, 0.0
        %v1079 = vmax.f32 %v1063, 0.0
        %v1080 = vmax.f32 %v1064, 0.0
        %v1081 = vpack.c.bf16 %v1066, %v1065
        %v1082 = vpack.c.bf16 %v1068, %v1067
        %v1083 = vpack.c.bf16 %v1070, %v1069
        %v1084 = vpack.c.bf16 %v1072, %v1071
        %v1085 = vpack.c.bf16 %v1074, %v1073
        %v1086 = vpack.c.bf16 %v1076, %v1075
        %v1087 = vpack.c.bf16 %v1078, %v1077
        %v1088 = vpack.c.bf16 %v1080, %v1079
        %v1089 = vld [vmem:[%s416] sm:$0xf]
        %v1090 = vld [vmem:[%s416 + $0x4] sm:$0xf]
        %v1091 = vld [vmem:[#allocation11] sm:$0xf]
        %v1092 = vld [vmem:[#allocation11 + $0x4] sm:$0xf]
        %v1093 = vld [vmem:[#allocation11 + $0x8] sm:$0xf]
        %v1094 = vld [vmem:[#allocation11 + $0xc] sm:$0xf]
        %v1095 = vld [vmem:[#allocation11 + $0x10] sm:$0xf]
        %v1096 = vld [vmem:[#allocation11 + $0x14] sm:$0xf]
        %v1097 = vld [vmem:[#allocation11 + $0x18] sm:$0xf]
        %v1098 = vld [vmem:[#allocation11 + $0x1c] sm:$0xf]
        %v1099 = vld [vmem:[#allocation11 + $0x20] sm:$0xf]
        %v1100 = vld [vmem:[#allocation11 + $0x24] sm:$0xf]
        %v1101 = vld [vmem:[#allocation11 + $0x28] sm:$0xf]
        %v1102 = vld [vmem:[#allocation11 + $0x2c] sm:$0xf]
        %v1103 = vld [vmem:[#allocation11 + $0x30] sm:$0xf]
        %v1104 = vld [vmem:[#allocation11 + $0x34] sm:$0xf]
        %v1105 = vld [vmem:[#allocation11 + $0x38] sm:$0xf]
        %v1106 = vld [vmem:[#allocation11 + $0x3c] sm:$0xf]
        %v1107 = vld [vmem:[#allocation13] sm:$0xf]
        %v1108 = vld [vmem:[#allocation13 + $0x4] sm:$0xf]
        %v1109 = vld [vmem:[#allocation13 + $0x8] sm:$0xf]
        %v1110 = vld [vmem:[#allocation13 + $0xc] sm:$0xf]
        %v1111 = vld [vmem:[#allocation13 + $0x10] sm:$0xf]
        %v1112 = vld [vmem:[#allocation13 + $0x14] sm:$0xf]
        %v1113 = vld [vmem:[#allocation13 + $0x18] sm:$0xf]
        %v1114 = vld [vmem:[#allocation13 + $0x1c] sm:$0xf]
        %v1115 = vld [vmem:[#allocation13 + $0x20] sm:$0xf]
        %v1116 = vld [vmem:[#allocation13 + $0x24] sm:$0xf]
        %v1117 = vld [vmem:[#allocation13 + $0x28] sm:$0xf]
        %v1118 = vld [vmem:[#allocation13 + $0x2c] sm:$0xf]
        %v1119 = vld [vmem:[#allocation13 + $0x30] sm:$0xf]
        %v1120 = vld [vmem:[#allocation13 + $0x34] sm:$0xf]
        %v1121 = vld [vmem:[#allocation13 + $0x38] sm:$0xf]
        %v1122 = vld [vmem:[#allocation13 + $0x3c] sm:$0xf]
        %v1123 = vld [vmem:[%s8] sm:$0x1]
        %v1126 = vunpack.c.l.b16 %v1089
        %v1127 = vunpack.c.l.b16 %v1090
        %v1128 = vpack.c.b16 %v1127, %v1126
        %1130 = vmatprep.subr.bf16.mxu0 0
        %1131 = vmatpush1.bf16.msra.mxu0 %v1081
        %1132 = vmatprep.subr.bf16.mxu0 0
        %1133 = vmatpush1.bf16.msra.mxu0 %v1082
        %1134 = vmatprep.subr.bf16.mxu0 0
        %1135 = vmatpush1.bf16.msra.mxu0 %v1083
        %1136 = vmatprep.subr.bf16.mxu0 0
        %1137 = vmatpush1.bf16.msra.mxu0 %v1084
        %1138 = vmatprep.subr.bf16.mxu0 0
        %1139 = vmatpush1.bf16.msra.mxu0 %v1085
        %1140 = vmatprep.subr.bf16.mxu0 0
        %1141 = vmatpush1.bf16.msra.mxu0 %v1086
        %1142 = vmatprep.subr.bf16.mxu0 0
        %1143 = vmatpush1.bf16.msra.mxu0 %v1087
        %1144 = vmatprep.subr.bf16.mxu0 0
        %1145 = vmatpush1.bf16.msra.mxu0 %v1088
        %1146 = vmatprep.subr.bf16.mxu0 0
        %1147 = vmatpush1.bf16.msra.mxu0 0
        %1148 = vmatprep.subr.bf16.mxu0 0
        %1149 = vmatpush1.bf16.msra.mxu0 0
        %1150 = vmatprep.subr.bf16.mxu0 0
        %1151 = vmatpush1.bf16.msra.mxu0 0
        %1152 = vmatprep.subr.bf16.mxu0 0
        %1153 = vmatpush1.bf16.msra.mxu0 0
        %1154 = vmatprep.subr.bf16.mxu0 0
        %1155 = vmatpush1.bf16.msra.mxu0 0
        %1156 = vmatprep.subr.bf16.mxu0 0
        %1157 = vmatpush1.bf16.msra.mxu0 0
        %1158 = vmatprep.subr.bf16.mxu0 0
        %1159 = vmatpush1.bf16.msra.mxu0 0
        %1160 = vmatprep.subr.bf16.mxu0 0
        %1161 = vmatpush1.bf16.msra.mxu0 0
        %1162 = vmatprep.mubr.bf16.mxu0 0
        %1163 = vmatmul.mubr.bf16.gmra.mrb[0].mxu0 %v1128
        %v1164 = vpop.f32.mrb[0].mxu0
        %v1165 = vadd.f32 0.0, %v1164
        %v1166 = vpop.f32.mrb[0].mxu0
        %v1167 = vpop.f32.mrb[0].mxu0
        %v1168 = vadd.f32 0.0, %v1167
        %v1169 = vpop.f32.mrb[0].mxu0
        %1170 = vdwg.mxu0
        %v1171 = vpack.c.bf16 %v1168, %v1165
        %v1188 = vunpack.c.l.b16 %v1107
        %v1189 = vunpack.c.l.b16 %v1108
        %v1190 = vunpack.c.l.b16 %v1109
        %v1191 = vunpack.c.l.b16 %v1110
        %v1192 = vunpack.c.l.b16 %v1111
        %v1193 = vunpack.c.l.b16 %v1112
        %v1194 = vunpack.c.l.b16 %v1113
        %v1195 = vunpack.c.l.b16 %v1114
        %v1196 = vunpack.c.l.b16 %v1115
        %v1197 = vunpack.c.l.b16 %v1116
        %v1198 = vunpack.c.l.b16 %v1117
        %v1199 = vunpack.c.l.b16 %v1118
        %v1200 = vunpack.c.l.b16 %v1119
        %v1201 = vunpack.c.l.b16 %v1120
        %v1202 = vunpack.c.l.b16 %v1121
        %v1203 = vunpack.c.l.b16 %v1122
        %v1204 = vpack.c.b16 %v1189, %v1188
        %v1205 = vpack.c.b16 %v1191, %v1190
        %v1206 = vpack.c.b16 %v1193, %v1192
        %v1207 = vpack.c.b16 %v1195, %v1194
        %v1208 = vpack.c.b16 %v1197, %v1196
        %v1209 = vpack.c.b16 %v1199, %v1198
        %v1210 = vpack.c.b16 %v1201, %v1200
        %v1211 = vpack.c.b16 %v1203, %v1202
        %1220 = vmatprep.subr.bf16.mxu0 0
        %1221 = vmatpush1.bf16.msra.mxu0 %v1204
        %1222 = vmatprep.subr.bf16.mxu0 0
        %1223 = vmatpush1.bf16.msra.mxu0 %v1205
        %1224 = vmatprep.subr.bf16.mxu0 0
        %1225 = vmatpush1.bf16.msra.mxu0 %v1206
        %1226 = vmatprep.subr.bf16.mxu0 0
        %1227 = vmatpush1.bf16.msra.mxu0 %v1207
        %1228 = vmatprep.subr.bf16.mxu0 0
        %1229 = vmatpush1.bf16.msra.mxu0 %v1208
        %1230 = vmatprep.subr.bf16.mxu0 0
        %1231 = vmatpush1.bf16.msra.mxu0 %v1209
        %1232 = vmatprep.subr.bf16.mxu0 0
        %1233 = vmatpush1.bf16.msra.mxu0 %v1210
        %1234 = vmatprep.subr.bf16.mxu0 0
        %1235 = vmatpush1.bf16.msra.mxu0 %v1211
        %1236 = vmatprep.subr.bf16.mxu0 0
        %1237 = vmatpush1.bf16.msra.mxu0 0
        %1238 = vmatprep.subr.bf16.mxu0 0
        %1239 = vmatpush1.bf16.msra.mxu0 0
        %1240 = vmatprep.subr.bf16.mxu0 0
        %1241 = vmatpush1.bf16.msra.mxu0 0
        %1242 = vmatprep.subr.bf16.mxu0 0
        %1243 = vmatpush1.bf16.msra.mxu0 0
        %1244 = vmatprep.subr.bf16.mxu0 0
        %1245 = vmatpush1.bf16.msra.mxu0 0
        %1246 = vmatprep.subr.bf16.mxu0 0
        %1247 = vmatpush1.bf16.msra.mxu0 0
        %1248 = vmatprep.subr.bf16.mxu0 0
        %1249 = vmatpush1.bf16.msra.mxu0 0
        %1250 = vmatprep.subr.bf16.mxu0 0
        %1251 = vmatpush1.bf16.msra.mxu0 0
        %1252 = vmatprep.mubr.bf16.mxu0 0
        %1253 = vmatmul.mubr.bf16.gmra.mrb[0].mxu0 %v1081
        %v1254 = vpop.f32.mrb[0].mxu0
        %v1255 = vadd.f32 0.0, %v1254
        %v1256 = vpop.f32.mrb[0].mxu0
        %v1257 = vpop.f32.mrb[0].mxu0
        %v1258 = vadd.f32 0.0, %v1257
        %v1259 = vpop.f32.mrb[0].mxu0
        %1260 = vdwg.mxu0
        %v1277 = vunpack.c.l.b16 %v1091
        %v1278 = vunpack.c.l.b16 %v1092
        %v1279 = vunpack.c.l.b16 %v1093
        %v1280 = vunpack.c.l.b16 %v1094
        %v1281 = vunpack.c.l.b16 %v1095
        %v1282 = vunpack.c.l.b16 %v1096
        %v1283 = vunpack.c.l.b16 %v1097
        %v1284 = vunpack.c.l.b16 %v1098
        %v1285 = vunpack.c.l.b16 %v1099
        %v1286 = vunpack.c.l.b16 %v1100
        %v1287 = vunpack.c.l.b16 %v1101
        %v1288 = vunpack.c.l.b16 %v1102
        %v1289 = vunpack.c.l.b16 %v1103
        %v1290 = vunpack.c.l.b16 %v1104
        %v1291 = vunpack.c.l.b16 %v1105
        %v1292 = vunpack.c.l.b16 %v1106
        %v1293 = vpack.c.b16 %v1278, %v1277
        %v1294 = vpack.c.b16 %v1280, %v1279
        %v1295 = vpack.c.b16 %v1282, %v1281
        %v1296 = vpack.c.b16 %v1284, %v1283
        %v1297 = vpack.c.b16 %v1286, %v1285
        %v1298 = vpack.c.b16 %v1288, %v1287
        %v1299 = vpack.c.b16 %v1290, %v1289
        %v1300 = vpack.c.b16 %v1292, %v1291
        %1309 = vmatprep.subr.bf16.mxu0 0
        %1310 = vmatpush1.bf16.msra.mxu0 %v1293
        %1311 = vmatprep.subr.bf16.mxu0 0
        %1312 = vmatpush1.bf16.msra.mxu0 %v1294
        %1313 = vmatprep.subr.bf16.mxu0 0
        %1314 = vmatpush1.bf16.msra.mxu0 %v1295
        %1315 = vmatprep.subr.bf16.mxu0 0
        %1316 = vmatpush1.bf16.msra.mxu0 %v1296
        %1317 = vmatprep.subr.bf16.mxu0 0
        %1318 = vmatpush1.bf16.msra.mxu0 %v1297
        %1319 = vmatprep.subr.bf16.mxu0 0
        %1320 = vmatpush1.bf16.msra.mxu0 %v1298
        %1321 = vmatprep.subr.bf16.mxu0 0
        %1322 = vmatpush1.bf16.msra.mxu0 %v1299
        %1323 = vmatprep.subr.bf16.mxu0 0
        %1324 = vmatpush1.bf16.msra.mxu0 %v1300
        %1325 = vmatprep.subr.bf16.mxu0 0
        %1326 = vmatpush1.bf16.msra.mxu0 0
        %1327 = vmatprep.subr.bf16.mxu0 0
        %1328 = vmatpush1.bf16.msra.mxu0 0
        %1329 = vmatprep.subr.bf16.mxu0 0
        %1330 = vmatpush1.bf16.msra.mxu0 0
        %1331 = vmatprep.subr.bf16.mxu0 0
        %1332 = vmatpush1.bf16.msra.mxu0 0
        %1333 = vmatprep.subr.bf16.mxu0 0
        %1334 = vmatpush1.bf16.msra.mxu0 0
        %1335 = vmatprep.subr.bf16.mxu0 0
        %1336 = vmatpush1.bf16.msra.mxu0 0
        %1337 = vmatprep.subr.bf16.mxu0 0
        %1338 = vmatpush1.bf16.msra.mxu0 0
        %1339 = vmatprep.subr.bf16.mxu0 0
        %1340 = vmatpush1.bf16.msra.mxu0 0
        %1341 = vmatprep.mubr.bf16.mxu0 0
        %1342 = vmatmul.mubr.bf16.gmra.mrb[0].mxu0 %v1171
        %v1343 = vpop.f32.mrb[0].mxu0
        %v1344 = vadd.f32 %v1255, %v1343
        %v1345 = vpop.f32.mrb[0].mxu0
        %v1346 = vpop.f32.mrb[0].mxu0
        %v1347 = vadd.f32 %v1258, %v1346
        %v1348 = vpop.f32.mrb[0].mxu0
        %1349 = vdwg.mxu0
        %v1351 = vlaneseq
        %v1352 = vshrl.u32 %v1351, 7
        %v1353 = vsub.s32 0, %v1352
        %v1354 = vrot.slane %v1123, %v1353
        %v1356 = vadd.f32 %v1344, %v1354
        %v1357 = vadd.f32 %v1347, %v1354
        %1358 = vst [vmem:[%s485] sm:$0xff] %v1356
        %1359 = vst [vmem:[%s485 + $0x8] sm:$0xff] %v1357
        %s1360 = sand.u32 %s243, 1
        %s1361 = scalar_lea.sflag [#allocation4], %s1360
        %s1362 = sand.u32 %s243, 1
        %s1363 = smul.addr %s1362, 16
        %s1364 = scalar_lea.vmem [#allocation14], %s1363
        // Predicated region
        $region85: #{tpu_custom_call.1} parent=55 // pred_check
          %p1365 = pneg %p253
        $region86: #{tpu_custom_call.1} parent=55 // pred_check_branch
          %1367 = sbr.rel (%p1365) target = $region88
        $region87: #{tpu_custom_call.1} parent=55 // pred_region
          %s1369 = ssub.s32 256, 256
          %1370 = vsyncadd %s1361, %s1369
          %s1371 = smul.addr %s31, 2
          %s1372 = smul.addr %s1371, 128
          %s1373 = scalar_lea.hbm %s9, %s1372
          %s1374 = sshll.u32 %s1364, 4
          %s1375 = int_to_ptr.vmem [resolvable:$true] %s1374
          %1380 = dma.vmem_to_hbm [thread:$0]  %s1375, 256, %s1373, %s1361, 128, 128, 8
        $region88: #{tpu_custom_call.1} parent=55 // pred_fallthru
          _
      $region56: #{tpu_custom_call.1} parent=5 // pred_fallthru
        _
      %p1381 = scmp.le.s32.totalorder 2, %s26
      // Predicated region
      $region89: #{tpu_custom_call.1} parent=5 // pred_check
        %p1382 = pneg %p1381
      $region90: #{tpu_custom_call.1} parent=5 // pred_check_branch
        %1384 = sbr.rel (%p1382) target = $region92
      $region91: #{tpu_custom_call.1} parent=5 // pred_region
        %s1385 = ssub.s32 %s26, 2
        // Predicated region
        $region93: #{tpu_custom_call.1} parent=91 // pred_check
          %p1386 = pneg %p259
        $region94: #{tpu_custom_call.1} parent=91 // pred_check_branch
          %1388 = sbr.rel (%p1386) target = $region96
        $region95: #{tpu_custom_call.1} parent=91 // pred_region
          %s1389 = sand.u32 %s244, 1
          %s1390 = scalar_lea.sflag [#allocation4], %s1389
          %s1391 = sand.u32 %s244, 1
          %s1392 = smul.addr %s1391, 16
          %s1393 = scalar_lea.vmem [#allocation14], %s1392
          %1394 = dma.done %s1390, 256
        $region96: #{tpu_custom_call.1} parent=91 // pred_fallthru
          _
      $region92: #{tpu_custom_call.1} parent=5 // pred_fallthru
        _
    $region6: #{tpu_custom_call.1} parent=1 // loop_footer
      %s30 = sadd.s32 1, %s26
    $region7: #{tpu_custom_call.1} parent=1 // loop_footer_branch
      %25 = sbr.rel target = $region3
    $region8: #{tpu_custom_call.1} parent=1 // loop_exit
      _
    %1395 = vsyncpa [#allocation3], 1
    %s1396 = scalar_lea.sflag [#allocation3], 1
    %1397 = vsyncpa %s1396, 1
    %1398 = vsyncpa [#allocation6], 1
    %s1399 = scalar_lea.sflag [#allocation6], 1
    %1400 = vsyncpa %s1399, 1
    %1401 = vsyncpa [#allocation9], 1
    %1402 = vsyncpa [#allocation12], 1
    %1403 = vsyncpa [#allocation4], 1
    %s1404 = scalar_lea.sflag [#allocation4], 1
    %1405 = vsyncpa %s1404, 1

</llo_original>
